<compile_context>
chip_gen: v6e
topology: v6e:2x2x1
jax: 0.10.0
libtpu: 0.0.40
codegen_flags: <defaults>
</compile_context>

<pallas_src>
import jax
import jax.numpy as jnp
from jax import lax
from jax.experimental import pallas as pl
from jax.experimental.pallas import tpu as pltpu


def lstm_tagger_kernel(ids_ref, emb_ref, w_ih_ref, w_hh_ref, b_ref,
                       w_out_ref, b_out_ref, out_ref, x_sc, h_sc):
    """Embedding gather + LSTM recurrence + hidden2tag + log_softmax.

    ids_ref   : (S,)      int32 token ids              (SMEM)
    emb_ref   : (V, 1, E) embedding table              (VMEM)
    w_ih_ref  : (E, 4H)   input->gates weight   (transposed torch weight_ih_l0)
    w_hh_ref  : (H, 4H)   hidden->gates weight  (transposed torch weight_hh_l0)
    b_ref     : (1, 4H)   b_ih + b_hh
    w_out_ref : (H, T)    hidden2tag weight (transposed)
    b_out_ref : (1, T)    hidden2tag bias
    out_ref   : (S, T)    log-softmax tag scores
    x_sc      : (S, E)    VMEM scratch: gathered embeddings
    h_sc      : (S, H)    VMEM scratch: per-step hidden states
    """
    S = out_ref.shape[0]
    H = w_hh_ref.shape[0]

    # 1) Gather the whole sentence's embeddings (dynamic leading-dim loads).
    for t in range(S):
        x_sc[pl.ds(t, 1), :] = emb_ref[ids_ref[t]]                      # (1, E)

    # 2) Hoisted input projection + fused bias: one (S,E)@(E,4H) MXU call,
    #    off the serial recurrence path.
    xw = (jnp.dot(x_sc[...], w_ih_ref[...],
                  preferred_element_type=jnp.float32) + b_ref[...])     # (S, 4H)

    # Lane mask selecting the g-gate (tanh) lanes of the fused gate vector.
    lane = lax.broadcasted_iota(jnp.int32, (1, 4 * H), 1)
    g_mask = (lane >= 2 * H) & (lane < 3 * H)

    # 3) Serial recurrence, fully unrolled (S is static and small).  Only the
    #    h @ W_hh matmul and the gate nonlinearities sit on the critical path.
    h = jnp.zeros((1, H), jnp.float32)
    c = jnp.zeros((1, H), jnp.float32)
    for t in range(S):
        gates = xw[t:t + 1, :] + jnp.dot(
            h, w_hh_ref[...], preferred_element_type=jnp.float32)       # (1, 4H)
        # One full-width sigmoid + one full-width tanh + select; PyTorch
        # nn.LSTM gate order: input, forget, cell(g), output.
        act = jnp.where(g_mask, jnp.tanh(gates), jax.nn.sigmoid(gates))
        i_g = act[:, 0 * H:1 * H]
        f_g = act[:, 1 * H:2 * H]
        g_g = act[:, 2 * H:3 * H]
        o_g = act[:, 3 * H:4 * H]
        c = f_g * c + i_g * g_g
        h = o_g * jnp.tanh(c)
        h_sc[pl.ds(t, 1), :] = h

    # 4) hidden2tag + log_softmax(dim=1), batched over all S rows, one store.
    tag = (jnp.dot(h_sc[...], w_out_ref[...],
                   preferred_element_type=jnp.float32) + b_out_ref[...])  # (S, T)
    m = jnp.max(tag, axis=1, keepdims=True)
    shifted = tag - m
    lse = jnp.log(jnp.sum(jnp.exp(shifted), axis=1, keepdims=True))
    out_ref[...] = shifted - lse


def init_params(key, embedding_dim, hidden_dim, vocab_size, target_size):
    ks = jax.random.split(key, 6)
    scale = 0.1
    return {
        "embedding": scale * jax.random.normal(ks[0], (vocab_size, embedding_dim), jnp.float32),
        "w_ih": scale * jax.random.normal(ks[1], (embedding_dim, 4 * hidden_dim), jnp.float32),
        "w_hh": scale * jax.random.normal(ks[2], (hidden_dim, 4 * hidden_dim), jnp.float32),
        # b = b_ih + b_hh folded into one bias
        "b": scale * jax.random.normal(ks[3], (1, 4 * hidden_dim), jnp.float32),
        "w_out": scale * jax.random.normal(ks[4], (hidden_dim, target_size), jnp.float32),
        "b_out": scale * jax.random.normal(ks[5], (1, target_size), jnp.float32),
    }


def lstm_tagger_forward(params, sentence, char_rep_sent):
    """sentence: (S,) int32 token ids; char_rep_sent: (S, 1, C) float32 (unused,
    the reference forward concatenates it but never consumes the result)."""
    del char_rep_sent  # dead in the reference forward (concat result unused)

    V, E = params["embedding"].shape
    H = params["w_hh"].shape[0]
    T = params["b_out"].shape[-1]
    S = sentence.shape[0]

    # (V, 1, E) layout so the in-kernel gather is a dynamic leading-dim load.
    emb3 = params["embedding"].reshape(V, 1, E)

    return pl.pallas_call(
        lstm_tagger_kernel,
        out_shape=jax.ShapeDtypeStruct((S, T), jnp.float32),
        in_specs=[
            pl.BlockSpec(memory_space=pltpu.MemorySpace.SMEM),   # token ids
            pl.BlockSpec(memory_space=pltpu.MemorySpace.VMEM),   # embedding (V,1,E)
            pl.BlockSpec(memory_space=pltpu.MemorySpace.VMEM),   # w_ih
            pl.BlockSpec(memory_space=pltpu.MemorySpace.VMEM),   # w_hh
            pl.BlockSpec(memory_space=pltpu.MemorySpace.VMEM),   # b
            pl.BlockSpec(memory_space=pltpu.MemorySpace.VMEM),   # w_out
            pl.BlockSpec(memory_space=pltpu.MemorySpace.VMEM),   # b_out
        ],
        out_specs=pl.BlockSpec(memory_space=pltpu.MemorySpace.VMEM),
        scratch_shapes=[
            pltpu.VMEM((S, E), jnp.float32),   # gathered embeddings
            pltpu.VMEM((S, H), jnp.float32),   # per-step hidden states
        ],
    )(sentence, emb3, params["w_ih"], params["w_hh"], params["b"],
      params["w_out"], params["b_out"])


def lstm_tagger_reference(params, sentence):
    """Pure-JAX reference of the same forward pass (for correctness check)."""
    x = jnp.take(params["embedding"], sentence, axis=0)   # (S, E)
    H = params["w_hh"].shape[0]

    def step(carry, xt):
        h, c = carry
        gates = xt @ params["w_ih"] + h @ params["w_hh"] + params["b"][0]
        i = jax.nn.sigmoid(gates[0 * H:1 * H])
        f = jax.nn.sigmoid(gates[1 * H:2 * H])
        g = jnp.tanh(gates[2 * H:3 * H])
        o = jax.nn.sigmoid(gates[3 * H:4 * H])
        c = f * c + i * g
        h = o * jnp.tanh(c)
        return (h, c), h

    _, hs = lax.scan(step, (jnp.zeros((H,), jnp.float32),
                            jnp.zeros((H,), jnp.float32)), x)
    tag = hs @ params["w_out"] + params["b_out"][0]
    return jax.nn.log_softmax(tag, axis=1)


if __name__ == "__main__":
    EMBEDDING_DIM = 32
    HIDDEN_DIM = 32
    VOCAB_SIZE = 20
    TARGET_SIZE = 8
    SEQ_LEN = 8
    CHAR_DIM = 16

    key = jax.random.PRNGKey(0)
    k_param, k_sent, k_char = jax.random.split(key, 3)

    params = init_params(k_param, EMBEDDING_DIM, HIDDEN_DIM, VOCAB_SIZE, TARGET_SIZE)
    sentence = jax.random.randint(k_sent, (SEQ_LEN,), 0, VOCAB_SIZE, dtype=jnp.int32)
    char_rep_sent = jax.random.normal(k_char, (SEQ_LEN, 1, CHAR_DIM), jnp.float32)

    out = jax.jit(lstm_tagger_forward)(params, sentence, char_rep_sent)
    out = jax.block_until_ready(out)

    assert out.shape == (SEQ_LEN, TARGET_SIZE)
    # log_softmax rows must sum to ~1 in prob space
    assert jnp.allclose(jnp.sum(jnp.exp(out), axis=1), 1.0, atol=1e-4)
    # match a pure-JAX reference of the same forward pass
    ref = jax.jit(lstm_tagger_reference)(params, sentence)
    assert jnp.allclose(out, ref, atol=1e-4, rtol=1e-4), float(jnp.max(jnp.abs(out - ref)))
    print("KERNEL_OK")
</pallas_src>

<mosaic_0001>
module attributes {stable_mosaic.version = 11 : i64} {
  func.func @lstm_tagger_kernel(%arg0: memref<8xi32, #tpu.memory_space<smem>>, %arg1: memref<20x1x32xf32, #tpu.memory_space<vmem>>, %arg2: memref<32x128xf32, #tpu.memory_space<vmem>>, %arg3: memref<32x128xf32, #tpu.memory_space<vmem>>, %arg4: memref<1x128xf32, #tpu.memory_space<vmem>>, %arg5: memref<32x8xf32, #tpu.memory_space<vmem>>, %arg6: memref<1x8xf32, #tpu.memory_space<vmem>>, %arg7: memref<8x8xf32, #tpu.memory_space<vmem>>, %arg8: memref<8x32xf32, #tpu.memory_space<vmem>>, %arg9: memref<8x32xf32, #tpu.memory_space<vmem>>) attributes {dimension_semantics = [], scalar_prefetch = 0 : i64, scratch_operands = 2 : i64, tpu.core_type = #tpu.core_type<tc>} {
    %c0 = arith.constant 0 : index
    %0 = memref.load %arg0[%c0] : memref<8xi32, #tpu.memory_space<smem>>
    %1 = arith.index_cast %0 : i32 to index
    %c0_0 = arith.constant 0 : index
    %c0_1 = arith.constant 0 : index
    %2 = vector.load %arg1[%1, %c0_0, %c0_1] : memref<20x1x32xf32, #tpu.memory_space<vmem>>, vector<1x1x32xf32>
    %3 = vector.shape_cast %2 : vector<1x1x32xf32> to vector<1x32xf32>
    %c0_2 = arith.constant 0 : index
    %c0_3 = arith.constant 0 : index
    %4 = vector.load %arg8[%c0_2, %c0_3] : memref<8x32xf32, #tpu.memory_space<vmem>>, vector<1x32xf32>
    tpu.vector_store %arg8[%c0_2, %c0_3], %3 {strides = array<i32>} : memref<8x32xf32, #tpu.memory_space<vmem>>, vector<1x32xf32>,
    %c1 = arith.constant 1 : index
    %5 = memref.load %arg0[%c1] : memref<8xi32, #tpu.memory_space<smem>>
    %6 = arith.index_cast %5 : i32 to index
    %c0_4 = arith.constant 0 : index
    %c0_5 = arith.constant 0 : index
    %7 = vector.load %arg1[%6, %c0_4, %c0_5] : memref<20x1x32xf32, #tpu.memory_space<vmem>>, vector<1x1x32xf32>
    %8 = vector.shape_cast %7 : vector<1x1x32xf32> to vector<1x32xf32>
    %c1_6 = arith.constant 1 : index
    %c0_7 = arith.constant 0 : index
    %9 = vector.load %arg8[%c1_6, %c0_7] : memref<8x32xf32, #tpu.memory_space<vmem>>, vector<1x32xf32>
    tpu.vector_store %arg8[%c1_6, %c0_7], %8 {strides = array<i32>} : memref<8x32xf32, #tpu.memory_space<vmem>>, vector<1x32xf32>,
    %c2 = arith.constant 2 : index
    %10 = memref.load %arg0[%c2] : memref<8xi32, #tpu.memory_space<smem>>
    %11 = arith.index_cast %10 : i32 to index
    %c0_8 = arith.constant 0 : index
    %c0_9 = arith.constant 0 : index
    %12 = vector.load %arg1[%11, %c0_8, %c0_9] : memref<20x1x32xf32, #tpu.memory_space<vmem>>, vector<1x1x32xf32>
    %13 = vector.shape_cast %12 : vector<1x1x32xf32> to vector<1x32xf32>
    %c2_10 = arith.constant 2 : index
    %c0_11 = arith.constant 0 : index
    %14 = vector.load %arg8[%c2_10, %c0_11] : memref<8x32xf32, #tpu.memory_space<vmem>>, vector<1x32xf32>
    tpu.vector_store %arg8[%c2_10, %c0_11], %13 {strides = array<i32>} : memref<8x32xf32, #tpu.memory_space<vmem>>, vector<1x32xf32>,
    %c3 = arith.constant 3 : index
    %15 = memref.load %arg0[%c3] : memref<8xi32, #tpu.memory_space<smem>>
    %16 = arith.index_cast %15 : i32 to index
    %c0_12 = arith.constant 0 : index
    %c0_13 = arith.constant 0 : index
    %17 = vector.load %arg1[%16, %c0_12, %c0_13] : memref<20x1x32xf32, #tpu.memory_space<vmem>>, vector<1x1x32xf32>
    %18 = vector.shape_cast %17 : vector<1x1x32xf32> to vector<1x32xf32>
    %c3_14 = arith.constant 3 : index
    %c0_15 = arith.constant 0 : index
    %19 = vector.load %arg8[%c3_14, %c0_15] : memref<8x32xf32, #tpu.memory_space<vmem>>, vector<1x32xf32>
    tpu.vector_store %arg8[%c3_14, %c0_15], %18 {strides = array<i32>} : memref<8x32xf32, #tpu.memory_space<vmem>>, vector<1x32xf32>,
    %c4 = arith.constant 4 : index
    %20 = memref.load %arg0[%c4] : memref<8xi32, #tpu.memory_space<smem>>
    %21 = arith.index_cast %20 : i32 to index
    %c0_16 = arith.constant 0 : index
    %c0_17 = arith.constant 0 : index
    %22 = vector.load %arg1[%21, %c0_16, %c0_17] : memref<20x1x32xf32, #tpu.memory_space<vmem>>, vector<1x1x32xf32>
    %23 = vector.shape_cast %22 : vector<1x1x32xf32> to vector<1x32xf32>
    %c4_18 = arith.constant 4 : index
    %c0_19 = arith.constant 0 : index
    %24 = vector.load %arg8[%c4_18, %c0_19] : memref<8x32xf32, #tpu.memory_space<vmem>>, vector<1x32xf32>
    tpu.vector_store %arg8[%c4_18, %c0_19], %23 {strides = array<i32>} : memref<8x32xf32, #tpu.memory_space<vmem>>, vector<1x32xf32>,
    %c5 = arith.constant 5 : index
    %25 = memref.load %arg0[%c5] : memref<8xi32, #tpu.memory_space<smem>>
    %26 = arith.index_cast %25 : i32 to index
    %c0_20 = arith.constant 0 : index
    %c0_21 = arith.constant 0 : index
    %27 = vector.load %arg1[%26, %c0_20, %c0_21] : memref<20x1x32xf32, #tpu.memory_space<vmem>>, vector<1x1x32xf32>
    %28 = vector.shape_cast %27 : vector<1x1x32xf32> to vector<1x32xf32>
    %c5_22 = arith.constant 5 : index
    %c0_23 = arith.constant 0 : index
    %29 = vector.load %arg8[%c5_22, %c0_23] : memref<8x32xf32, #tpu.memory_space<vmem>>, vector<1x32xf32>
    tpu.vector_store %arg8[%c5_22, %c0_23], %28 {strides = array<i32>} : memref<8x32xf32, #tpu.memory_space<vmem>>, vector<1x32xf32>,
    %c6 = arith.constant 6 : index
    %30 = memref.load %arg0[%c6] : memref<8xi32, #tpu.memory_space<smem>>
    %31 = arith.index_cast %30 : i32 to index
    %c0_24 = arith.constant 0 : index
    %c0_25 = arith.constant 0 : index
    %32 = vector.load %arg1[%31, %c0_24, %c0_25] : memref<20x1x32xf32, #tpu.memory_space<vmem>>, vector<1x1x32xf32>
    %33 = vector.shape_cast %32 : vector<1x1x32xf32> to vector<1x32xf32>
    %c6_26 = arith.constant 6 : index
    %c0_27 = arith.constant 0 : index
    %34 = vector.load %arg8[%c6_26, %c0_27] : memref<8x32xf32, #tpu.memory_space<vmem>>, vector<1x32xf32>
    tpu.vector_store %arg8[%c6_26, %c0_27], %33 {strides = array<i32>} : memref<8x32xf32, #tpu.memory_space<vmem>>, vector<1x32xf32>,
    %c7 = arith.constant 7 : index
    %35 = memref.load %arg0[%c7] : memref<8xi32, #tpu.memory_space<smem>>
    %36 = arith.index_cast %35 : i32 to index
    %c0_28 = arith.constant 0 : index
    %c0_29 = arith.constant 0 : index
    %37 = vector.load %arg1[%36, %c0_28, %c0_29] : memref<20x1x32xf32, #tpu.memory_space<vmem>>, vector<1x1x32xf32>
    %38 = vector.shape_cast %37 : vector<1x1x32xf32> to vector<1x32xf32>
    %c7_30 = arith.constant 7 : index
    %c0_31 = arith.constant 0 : index
    %39 = vector.load %arg8[%c7_30, %c0_31] : memref<8x32xf32, #tpu.memory_space<vmem>>, vector<1x32xf32>
    tpu.vector_store %arg8[%c7_30, %c0_31], %38 {strides = array<i32>} : memref<8x32xf32, #tpu.memory_space<vmem>>, vector<1x32xf32>,
    %c0_32 = arith.constant 0 : index
    %c0_33 = arith.constant 0 : index
    %40 = vector.load %arg8[%c0_32, %c0_33] : memref<8x32xf32, #tpu.memory_space<vmem>>, vector<8x32xf32>
    %c0_34 = arith.constant 0 : index
    %c0_35 = arith.constant 0 : index
    %41 = vector.load %arg2[%c0_34, %c0_35] : memref<32x128xf32, #tpu.memory_space<vmem>>, vector<32x128xf32>
    %cst = arith.constant dense<0.000000e+00> : vector<8x128xf32>
    %42 = tpu.matmul %40, %41, %cst {dimension_numbers = #tpu.dot_dimension_numbers<[1], [0], [0], [1], [0, 0, 1, 1], [], []>} : vector<8x32xf32>, vector<32x128xf32>, vector<8x128xf32> -> vector<8x128xf32>
    %c0_36 = arith.constant 0 : index
    %c0_37 = arith.constant 0 : index
    %43 = vector.load %arg4[%c0_36, %c0_37] : memref<1x128xf32, #tpu.memory_space<vmem>>, vector<1x128xf32>
    %44 = vector.broadcast %43 : vector<1x128xf32> to vector<8x128xf32>
    %45 = arith.addf %42, %44 : vector<8x128xf32>
    %46 = tpu.iota {dimensions = array<i32: 1>} : vector<1x128xi32>
    %c64_i32 = arith.constant 64 : i32
    %47 = vector.broadcast %c64_i32 : i32 to vector<1x128xi32>
    %48 = arith.cmpi sge, %46, %47 : vector<1x128xi32>
    %c96_i32 = arith.constant 96 : i32
    %49 = vector.broadcast %c96_i32 : i32 to vector<1x128xi32>
    %50 = arith.cmpi slt, %46, %49 : vector<1x128xi32>
    %51 = arith.andi %48, %50 : vector<1x128xi1>
    %cst_38 = arith.constant 0.000000e+00 : f32
    %52 = vector.broadcast %cst_38 : f32 to vector<1x32xf32>
    %cst_39 = arith.constant 0.000000e+00 : f32
    %53 = vector.broadcast %cst_39 : f32 to vector<1x32xf32>
    %54 = vector.extract_strided_slice %45 {offsets = [0, 0], sizes = [1, 128], strides = [1, 1]} : vector<8x128xf32> to vector<1x128xf32>
    %c0_40 = arith.constant 0 : index
    %c0_41 = arith.constant 0 : index
    %55 = vector.load %arg3[%c0_40, %c0_41] : memref<32x128xf32, #tpu.memory_space<vmem>>, vector<32x128xf32>
    %cst_42 = arith.constant dense<0.000000e+00> : vector<1x128xf32>
    %56 = tpu.matmul %52, %55, %cst_42 {dimension_numbers = #tpu.dot_dimension_numbers<[1], [0], [0], [1], [0, 0, 1, 1], [], []>} : vector<1x32xf32>, vector<32x128xf32>, vector<1x128xf32> -> vector<1x128xf32>
    %57 = arith.addf %54, %56 : vector<1x128xf32>
    %58 = math.tanh %57 : vector<1x128xf32>
    %59 = arith.negf %57 : vector<1x128xf32>
    %60 = math.exp %59 : vector<1x128xf32>
    %cst_43 = arith.constant 1.000000e+00 : f32
    %61 = vector.broadcast %cst_43 : f32 to vector<1x128xf32>
    %62 = arith.addf %61, %60 : vector<1x128xf32>
    %63 = arith.divf %61, %62 : vector<1x128xf32>
    %64 = arith.select %51, %58, %63 : vector<1x128xi1>, vector<1x128xf32>
    %65 = vector.extract_strided_slice %64 {offsets = [0, 0], sizes = [1, 32], strides = [1, 1]} : vector<1x128xf32> to vector<1x32xf32>
    %66 = vector.extract_strided_slice %64 {offsets = [0, 32], sizes = [1, 32], strides = [1, 1]} : vector<1x128xf32> to vector<1x32xf32>
    %67 = vector.extract_strided_slice %64 {offsets = [0, 64], sizes = [1, 32], strides = [1, 1]} : vector<1x128xf32> to vector<1x32xf32>
    %68 = vector.extract_strided_slice %64 {offsets = [0, 96], sizes = [1, 32], strides = [1, 1]} : vector<1x128xf32> to vector<1x32xf32>
    %69 = arith.mulf %66, %53 : vector<1x32xf32>
    %70 = arith.mulf %65, %67 : vector<1x32xf32>
    %71 = arith.addf %69, %70 : vector<1x32xf32>
    %72 = math.tanh %71 : vector<1x32xf32>
    %73 = arith.mulf %68, %72 : vector<1x32xf32>
    %c0_44 = arith.constant 0 : index
    %c0_45 = arith.constant 0 : index
    %74 = vector.load %arg9[%c0_44, %c0_45] : memref<8x32xf32, #tpu.memory_space<vmem>>, vector<1x32xf32>
    tpu.vector_store %arg9[%c0_44, %c0_45], %73 {strides = array<i32>} : memref<8x32xf32, #tpu.memory_space<vmem>>, vector<1x32xf32>,
    %75 = vector.extract_strided_slice %45 {offsets = [1, 0], sizes = [1, 128], strides = [1, 1]} : vector<8x128xf32> to vector<1x128xf32>
    %c0_46 = arith.constant 0 : index
    %c0_47 = arith.constant 0 : index
    %76 = vector.load %arg3[%c0_46, %c0_47] : memref<32x128xf32, #tpu.memory_space<vmem>>, vector<32x128xf32>
    %cst_48 = arith.constant dense<0.000000e+00> : vector<1x128xf32>
    %77 = tpu.matmul %73, %76, %cst_48 {dimension_numbers = #tpu.dot_dimension_numbers<[1], [0], [0], [1], [0, 0, 1, 1], [], []>} : vector<1x32xf32>, vector<32x128xf32>, vector<1x128xf32> -> vector<1x128xf32>
    %78 = arith.addf %75, %77 : vector<1x128xf32>
    %79 = math.tanh %78 : vector<1x128xf32>
    %80 = arith.negf %78 : vector<1x128xf32>
    %81 = math.exp %80 : vector<1x128xf32>
    %cst_49 = arith.constant 1.000000e+00 : f32
    %82 = vector.broadcast %cst_49 : f32 to vector<1x128xf32>
    %83 = arith.addf %82, %81 : vector<1x128xf32>
    %84 = arith.divf %82, %83 : vector<1x128xf32>
    %85 = arith.select %51, %79, %84 : vector<1x128xi1>, vector<1x128xf32>
    %86 = vector.extract_strided_slice %85 {offsets = [0, 0], sizes = [1, 32], strides = [1, 1]} : vector<1x128xf32> to vector<1x32xf32>
    %87 = vector.extract_strided_slice %85 {offsets = [0, 32], sizes = [1, 32], strides = [1, 1]} : vector<1x128xf32> to vector<1x32xf32>
    %88 = vector.extract_strided_slice %85 {offsets = [0, 64], sizes = [1, 32], strides = [1, 1]} : vector<1x128xf32> to vector<1x32xf32>
    %89 = vector.extract_strided_slice %85 {offsets = [0, 96], sizes = [1, 32], strides = [1, 1]} : vector<1x128xf32> to vector<1x32xf32>
    %90 = arith.mulf %87, %71 : vector<1x32xf32>
    %91 = arith.mulf %86, %88 : vector<1x32xf32>
    %92 = arith.addf %90, %91 : vector<1x32xf32>
    %93 = math.tanh %92 : vector<1x32xf32>
    %94 = arith.mulf %89, %93 : vector<1x32xf32>
    %c1_50 = arith.constant 1 : index
    %c0_51 = arith.constant 0 : index
    %95 = vector.load %arg9[%c1_50, %c0_51] : memref<8x32xf32, #tpu.memory_space<vmem>>, vector<1x32xf32>
    tpu.vector_store %arg9[%c1_50, %c0_51], %94 {strides = array<i32>} : memref<8x32xf32, #tpu.memory_space<vmem>>, vector<1x32xf32>,
    %96 = vector.extract_strided_slice %45 {offsets = [2, 0], sizes = [1, 128], strides = [1, 1]} : vector<8x128xf32> to vector<1x128xf32>
    %c0_52 = arith.constant 0 : index
    %c0_53 = arith.constant 0 : index
    %97 = vector.load %arg3[%c0_52, %c0_53] : memref<32x128xf32, #tpu.memory_space<vmem>>, vector<32x128xf32>
    %cst_54 = arith.constant dense<0.000000e+00> : vector<1x128xf32>
    %98 = tpu.matmul %94, %97, %cst_54 {dimension_numbers = #tpu.dot_dimension_numbers<[1], [0], [0], [1], [0, 0, 1, 1], [], []>} : vector<1x32xf32>, vector<32x128xf32>, vector<1x128xf32> -> vector<1x128xf32>
    %99 = arith.addf %96, %98 : vector<1x128xf32>
    %100 = math.tanh %99 : vector<1x128xf32>
    %101 = arith.negf %99 : vector<1x128xf32>
    %102 = math.exp %101 : vector<1x128xf32>
    %cst_55 = arith.constant 1.000000e+00 : f32
    %103 = vector.broadcast %cst_55 : f32 to vector<1x128xf32>
    %104 = arith.addf %103, %102 : vector<1x128xf32>
    %105 = arith.divf %103, %104 : vector<1x128xf32>
    %106 = arith.select %51, %100, %105 : vector<1x128xi1>, vector<1x128xf32>
    %107 = vector.extract_strided_slice %106 {offsets = [0, 0], sizes = [1, 32], strides = [1, 1]} : vector<1x128xf32> to vector<1x32xf32>
    %108 = vector.extract_strided_slice %106 {offsets = [0, 32], sizes = [1, 32], strides = [1, 1]} : vector<1x128xf32> to vector<1x32xf32>
    %109 = vector.extract_strided_slice %106 {offsets = [0, 64], sizes = [1, 32], strides = [1, 1]} : vector<1x128xf32> to vector<1x32xf32>
    %110 = vector.extract_strided_slice %106 {offsets = [0, 96], sizes = [1, 32], strides = [1, 1]} : vector<1x128xf32> to vector<1x32xf32>
    %111 = arith.mulf %108, %92 : vector<1x32xf32>
    %112 = arith.mulf %107, %109 : vector<1x32xf32>
    %113 = arith.addf %111, %112 : vector<1x32xf32>
    %114 = math.tanh %113 : vector<1x32xf32>
    %115 = arith.mulf %110, %114 : vector<1x32xf32>
    %c2_56 = arith.constant 2 : index
    %c0_57 = arith.constant 0 : index
    %116 = vector.load %arg9[%c2_56, %c0_57] : memref<8x32xf32, #tpu.memory_space<vmem>>, vector<1x32xf32>
    tpu.vector_store %arg9[%c2_56, %c0_57], %115 {strides = array<i32>} : memref<8x32xf32, #tpu.memory_space<vmem>>, vector<1x32xf32>,
    %117 = vector.extract_strided_slice %45 {offsets = [3, 0], sizes = [1, 128], strides = [1, 1]} : vector<8x128xf32> to vector<1x128xf32>
    %c0_58 = arith.constant 0 : index
    %c0_59 = arith.constant 0 : index
    %118 = vector.load %arg3[%c0_58, %c0_59] : memref<32x128xf32, #tpu.memory_space<vmem>>, vector<32x128xf32>
    %cst_60 = arith.constant dense<0.000000e+00> : vector<1x128xf32>
    %119 = tpu.matmul %115, %118, %cst_60 {dimension_numbers = #tpu.dot_dimension_numbers<[1], [0], [0], [1], [0, 0, 1, 1], [], []>} : vector<1x32xf32>, vector<32x128xf32>, vector<1x128xf32> -> vector<1x128xf32>
    %120 = arith.addf %117, %119 : vector<1x128xf32>
    %121 = math.tanh %120 : vector<1x128xf32>
    %122 = arith.negf %120 : vector<1x128xf32>
    %123 = math.exp %122 : vector<1x128xf32>
    %cst_61 = arith.constant 1.000000e+00 : f32
    %124 = vector.broadcast %cst_61 : f32 to vector<1x128xf32>
    %125 = arith.addf %124, %123 : vector<1x128xf32>
    %126 = arith.divf %124, %125 : vector<1x128xf32>
    %127 = arith.select %51, %121, %126 : vector<1x128xi1>, vector<1x128xf32>
    %128 = vector.extract_strided_slice %127 {offsets = [0, 0], sizes = [1, 32], strides = [1, 1]} : vector<1x128xf32> to vector<1x32xf32>
    %129 = vector.extract_strided_slice %127 {offsets = [0, 32], sizes = [1, 32], strides = [1, 1]} : vector<1x128xf32> to vector<1x32xf32>
    %130 = vector.extract_strided_slice %127 {offsets = [0, 64], sizes = [1, 32], strides = [1, 1]} : vector<1x128xf32> to vector<1x32xf32>
    %131 = vector.extract_strided_slice %127 {offsets = [0, 96], sizes = [1, 32], strides = [1, 1]} : vector<1x128xf32> to vector<1x32xf32>
    %132 = arith.mulf %129, %113 : vector<1x32xf32>
    %133 = arith.mulf %128, %130 : vector<1x32xf32>
    %134 = arith.addf %132, %133 : vector<1x32xf32>
    %135 = math.tanh %134 : vector<1x32xf32>
    %136 = arith.mulf %131, %135 : vector<1x32xf32>
    %c3_62 = arith.constant 3 : index
    %c0_63 = arith.constant 0 : index
    %137 = vector.load %arg9[%c3_62, %c0_63] : memref<8x32xf32, #tpu.memory_space<vmem>>, vector<1x32xf32>
    tpu.vector_store %arg9[%c3_62, %c0_63], %136 {strides = array<i32>} : memref<8x32xf32, #tpu.memory_space<vmem>>, vector<1x32xf32>,
    %138 = vector.extract_strided_slice %45 {offsets = [4, 0], sizes = [1, 128], strides = [1, 1]} : vector<8x128xf32> to vector<1x128xf32>
    %c0_64 = arith.constant 0 : index
    %c0_65 = arith.constant 0 : index
    %139 = vector.load %arg3[%c0_64, %c0_65] : memref<32x128xf32, #tpu.memory_space<vmem>>, vector<32x128xf32>
    %cst_66 = arith.constant dense<0.000000e+00> : vector<1x128xf32>
    %140 = tpu.matmul %136, %139, %cst_66 {dimension_numbers = #tpu.dot_dimension_numbers<[1], [0], [0], [1], [0, 0, 1, 1], [], []>} : vector<1x32xf32>, vector<32x128xf32>, vector<1x128xf32> -> vector<1x128xf32>
    %141 = arith.addf %138, %140 : vector<1x128xf32>
    %142 = math.tanh %141 : vector<1x128xf32>
    %143 = arith.negf %141 : vector<1x128xf32>
    %144 = math.exp %143 : vector<1x128xf32>
    %cst_67 = arith.constant 1.000000e+00 : f32
    %145 = vector.broadcast %cst_67 : f32 to vector<1x128xf32>
    %146 = arith.addf %145, %144 : vector<1x128xf32>
    %147 = arith.divf %145, %146 : vector<1x128xf32>
    %148 = arith.select %51, %142, %147 : vector<1x128xi1>, vector<1x128xf32>
    %149 = vector.extract_strided_slice %148 {offsets = [0, 0], sizes = [1, 32], strides = [1, 1]} : vector<1x128xf32> to vector<1x32xf32>
    %150 = vector.extract_strided_slice %148 {offsets = [0, 32], sizes = [1, 32], strides = [1, 1]} : vector<1x128xf32> to vector<1x32xf32>
    %151 = vector.extract_strided_slice %148 {offsets = [0, 64], sizes = [1, 32], strides = [1, 1]} : vector<1x128xf32> to vector<1x32xf32>
    %152 = vector.extract_strided_slice %148 {offsets = [0, 96], sizes = [1, 32], strides = [1, 1]} : vector<1x128xf32> to vector<1x32xf32>
    %153 = arith.mulf %150, %134 : vector<1x32xf32>
    %154 = arith.mulf %149, %151 : vector<1x32xf32>
    %155 = arith.addf %153, %154 : vector<1x32xf32>
    %156 = math.tanh %155 : vector<1x32xf32>
    %157 = arith.mulf %152, %156 : vector<1x32xf32>
    %c4_68 = arith.constant 4 : index
    %c0_69 = arith.constant 0 : index
    %158 = vector.load %arg9[%c4_68, %c0_69] : memref<8x32xf32, #tpu.memory_space<vmem>>, vector<1x32xf32>
    tpu.vector_store %arg9[%c4_68, %c0_69], %157 {strides = array<i32>} : memref<8x32xf32, #tpu.memory_space<vmem>>, vector<1x32xf32>,
    %159 = vector.extract_strided_slice %45 {offsets = [5, 0], sizes = [1, 128], strides = [1, 1]} : vector<8x128xf32> to vector<1x128xf32>
    %c0_70 = arith.constant 0 : index
    %c0_71 = arith.constant 0 : index
    %160 = vector.load %arg3[%c0_70, %c0_71] : memref<32x128xf32, #tpu.memory_space<vmem>>, vector<32x128xf32>
    %cst_72 = arith.constant dense<0.000000e+00> : vector<1x128xf32>
    %161 = tpu.matmul %157, %160, %cst_72 {dimension_numbers = #tpu.dot_dimension_numbers<[1], [0], [0], [1], [0, 0, 1, 1], [], []>} : vector<1x32xf32>, vector<32x128xf32>, vector<1x128xf32> -> vector<1x128xf32>
    %162 = arith.addf %159, %161 : vector<1x128xf32>
    %163 = math.tanh %162 : vector<1x128xf32>
    %164 = arith.negf %162 : vector<1x128xf32>
    %165 = math.exp %164 : vector<1x128xf32>
    %cst_73 = arith.constant 1.000000e+00 : f32
    %166 = vector.broadcast %cst_73 : f32 to vector<1x128xf32>
    %167 = arith.addf %166, %165 : vector<1x128xf32>
    %168 = arith.divf %166, %167 : vector<1x128xf32>
    %169 = arith.select %51, %163, %168 : vector<1x128xi1>, vector<1x128xf32>
    %170 = vector.extract_strided_slice %169 {offsets = [0, 0], sizes = [1, 32], strides = [1, 1]} : vector<1x128xf32> to vector<1x32xf32>
    %171 = vector.extract_strided_slice %169 {offsets = [0, 32], sizes = [1, 32], strides = [1, 1]} : vector<1x128xf32> to vector<1x32xf32>
    %172 = vector.extract_strided_slice %169 {offsets = [0, 64], sizes = [1, 32], strides = [1, 1]} : vector<1x128xf32> to vector<1x32xf32>
    %173 = vector.extract_strided_slice %169 {offsets = [0, 96], sizes = [1, 32], strides = [1, 1]} : vector<1x128xf32> to vector<1x32xf32>
    %174 = arith.mulf %171, %155 : vector<1x32xf32>
    %175 = arith.mulf %170, %172 : vector<1x32xf32>
    %176 = arith.addf %174, %175 : vector<1x32xf32>
    %177 = math.tanh %176 : vector<1x32xf32>
    %178 = arith.mulf %173, %177 : vector<1x32xf32>
    %c5_74 = arith.constant 5 : index
    %c0_75 = arith.constant 0 : index
    %179 = vector.load %arg9[%c5_74, %c0_75] : memref<8x32xf32, #tpu.memory_space<vmem>>, vector<1x32xf32>
    tpu.vector_store %arg9[%c5_74, %c0_75], %178 {strides = array<i32>} : memref<8x32xf32, #tpu.memory_space<vmem>>, vector<1x32xf32>,
    %180 = vector.extract_strided_slice %45 {offsets = [6, 0], sizes = [1, 128], strides = [1, 1]} : vector<8x128xf32> to vector<1x128xf32>
    %c0_76 = arith.constant 0 : index
    %c0_77 = arith.constant 0 : index
    %181 = vector.load %arg3[%c0_76, %c0_77] : memref<32x128xf32, #tpu.memory_space<vmem>>, vector<32x128xf32>
    %cst_78 = arith.constant dense<0.000000e+00> : vector<1x128xf32>
    %182 = tpu.matmul %178, %181, %cst_78 {dimension_numbers = #tpu.dot_dimension_numbers<[1], [0], [0], [1], [0, 0, 1, 1], [], []>} : vector<1x32xf32>, vector<32x128xf32>, vector<1x128xf32> -> vector<1x128xf32>
    %183 = arith.addf %180, %182 : vector<1x128xf32>
    %184 = math.tanh %183 : vector<1x128xf32>
    %185 = arith.negf %183 : vector<1x128xf32>
    %186 = math.exp %185 : vector<1x128xf32>
    %cst_79 = arith.constant 1.000000e+00 : f32
    %187 = vector.broadcast %cst_79 : f32 to vector<1x128xf32>
    %188 = arith.addf %187, %186 : vector<1x128xf32>
    %189 = arith.divf %187, %188 : vector<1x128xf32>
    %190 = arith.select %51, %184, %189 : vector<1x128xi1>, vector<1x128xf32>
    %191 = vector.extract_strided_slice %190 {offsets = [0, 0], sizes = [1, 32], strides = [1, 1]} : vector<1x128xf32> to vector<1x32xf32>
    %192 = vector.extract_strided_slice %190 {offsets = [0, 32], sizes = [1, 32], strides = [1, 1]} : vector<1x128xf32> to vector<1x32xf32>
    %193 = vector.extract_strided_slice %190 {offsets = [0, 64], sizes = [1, 32], strides = [1, 1]} : vector<1x128xf32> to vector<1x32xf32>
    %194 = vector.extract_strided_slice %190 {offsets = [0, 96], sizes = [1, 32], strides = [1, 1]} : vector<1x128xf32> to vector<1x32xf32>
    %195 = arith.mulf %192, %176 : vector<1x32xf32>
    %196 = arith.mulf %191, %193 : vector<1x32xf32>
    %197 = arith.addf %195, %196 : vector<1x32xf32>
    %198 = math.tanh %197 : vector<1x32xf32>
    %199 = arith.mulf %194, %198 : vector<1x32xf32>
    %c6_80 = arith.constant 6 : index
    %c0_81 = arith.constant 0 : index
    %200 = vector.load %arg9[%c6_80, %c0_81] : memref<8x32xf32, #tpu.memory_space<vmem>>, vector<1x32xf32>
    tpu.vector_store %arg9[%c6_80, %c0_81], %199 {strides = array<i32>} : memref<8x32xf32, #tpu.memory_space<vmem>>, vector<1x32xf32>,
    %201 = vector.extract_strided_slice %45 {offsets = [7, 0], sizes = [1, 128], strides = [1, 1]} : vector<8x128xf32> to vector<1x128xf32>
    %c0_82 = arith.constant 0 : index
    %c0_83 = arith.constant 0 : index
    %202 = vector.load %arg3[%c0_82, %c0_83] : memref<32x128xf32, #tpu.memory_space<vmem>>, vector<32x128xf32>
    %cst_84 = arith.constant dense<0.000000e+00> : vector<1x128xf32>
    %203 = tpu.matmul %199, %202, %cst_84 {dimension_numbers = #tpu.dot_dimension_numbers<[1], [0], [0], [1], [0, 0, 1, 1], [], []>} : vector<1x32xf32>, vector<32x128xf32>, vector<1x128xf32> -> vector<1x128xf32>
    %204 = arith.addf %201, %203 : vector<1x128xf32>
    %205 = math.tanh %204 : vector<1x128xf32>
    %206 = arith.negf %204 : vector<1x128xf32>
    %207 = math.exp %206 : vector<1x128xf32>
    %cst_85 = arith.constant 1.000000e+00 : f32
    %208 = vector.broadcast %cst_85 : f32 to vector<1x128xf32>
    %209 = arith.addf %208, %207 : vector<1x128xf32>
    %210 = arith.divf %208, %209 : vector<1x128xf32>
    %211 = arith.select %51, %205, %210 : vector<1x128xi1>, vector<1x128xf32>
    %212 = vector.extract_strided_slice %211 {offsets = [0, 0], sizes = [1, 32], strides = [1, 1]} : vector<1x128xf32> to vector<1x32xf32>
    %213 = vector.extract_strided_slice %211 {offsets = [0, 32], sizes = [1, 32], strides = [1, 1]} : vector<1x128xf32> to vector<1x32xf32>
    %214 = vector.extract_strided_slice %211 {offsets = [0, 64], sizes = [1, 32], strides = [1, 1]} : vector<1x128xf32> to vector<1x32xf32>
    %215 = vector.extract_strided_slice %211 {offsets = [0, 96], sizes = [1, 32], strides = [1, 1]} : vector<1x128xf32> to vector<1x32xf32>
    %216 = arith.mulf %213, %197 : vector<1x32xf32>
    %217 = arith.mulf %212, %214 : vector<1x32xf32>
    %218 = arith.addf %216, %217 : vector<1x32xf32>
    %219 = math.tanh %218 : vector<1x32xf32>
    %220 = arith.mulf %215, %219 : vector<1x32xf32>
    %c7_86 = arith.constant 7 : index
    %c0_87 = arith.constant 0 : index
    %221 = vector.load %arg9[%c7_86, %c0_87] : memref<8x32xf32, #tpu.memory_space<vmem>>, vector<1x32xf32>
    tpu.vector_store %arg9[%c7_86, %c0_87], %220 {strides = array<i32>} : memref<8x32xf32, #tpu.memory_space<vmem>>, vector<1x32xf32>,
    %c0_88 = arith.constant 0 : index
    %c0_89 = arith.constant 0 : index
    %222 = vector.load %arg9[%c0_88, %c0_89] : memref<8x32xf32, #tpu.memory_space<vmem>>, vector<8x32xf32>
    %c0_90 = arith.constant 0 : index
    %c0_91 = arith.constant 0 : index
    %223 = vector.load %arg5[%c0_90, %c0_91] : memref<32x8xf32, #tpu.memory_space<vmem>>, vector<32x8xf32>
    %cst_92 = arith.constant dense<0.000000e+00> : vector<8x8xf32>
    %224 = tpu.matmul %222, %223, %cst_92 {dimension_numbers = #tpu.dot_dimension_numbers<[1], [0], [0], [1], [0, 0, 1, 1], [], []>} : vector<8x32xf32>, vector<32x8xf32>, vector<8x8xf32> -> vector<8x8xf32>
    %c0_93 = arith.constant 0 : index
    %c0_94 = arith.constant 0 : index
    %225 = vector.load %arg6[%c0_93, %c0_94] : memref<1x8xf32, #tpu.memory_space<vmem>>, vector<1x8xf32>
    %226 = vector.broadcast %225 : vector<1x8xf32> to vector<8x8xf32>
    %227 = arith.addf %224, %226 : vector<8x8xf32>
    %cst_95 = arith.constant dense<0xFF800000> : vector<8xf32>
    %228 = vector.multi_reduction <maximumf>, %227, %cst_95 [1] : vector<8x8xf32> to vector<8xf32>
    %229 = vector.shape_cast %228 : vector<8xf32> to vector<8x1xf32>
    %230 = vector.broadcast %229 : vector<8x1xf32> to vector<8x8xf32>
    %231 = arith.subf %227, %230 : vector<8x8xf32>
    %232 = math.exp %231 : vector<8x8xf32>
    %cst_96 = arith.constant dense<0.000000e+00> : vector<8xf32>
    %233 = vector.multi_reduction <add>, %232, %cst_96 [1] : vector<8x8xf32> to vector<8xf32>
    %234 = vector.shape_cast %233 : vector<8xf32> to vector<8x1xf32>
    %235 = math.log %234 : vector<8x1xf32>
    %236 = vector.broadcast %235 : vector<8x1xf32> to vector<8x8xf32>
    %237 = arith.subf %231, %236 : vector<8x8xf32>
    %c0_97 = arith.constant 0 : index
    %c0_98 = arith.constant 0 : index
    %238 = vector.load %arg7[%c0_97, %c0_98] : memref<8x8xf32, #tpu.memory_space<vmem>>, vector<8x8xf32>
    tpu.vector_store %arg7[%c0_97, %c0_98], %237 {strides = array<i32>} : memref<8x8xf32, #tpu.memory_space<vmem>>, vector<8x8xf32>,
    return
  }
}

</mosaic_0001>

<llo_original>
// kernel: lstm_tagger_forward.1
$region0: #{lstm_tagger_forward.1}
  #allocation0 [shape = 'u32[]', space=smem, size = 0x4, offset = 0x4, fixed_abs, tag = 'smem constant byte address 0x4 - core index']
  #allocation1 [shape = 'u32[144,128]{1,0:T(1,128)}', space=vmem, size = 0x12000, scoped, tag = 'internal scratch']
  #allocation2 [shape = 'f32[8,32]{1,0:T(8,128)}', space=vmem, size = 0x1000, scoped, tag = 'scratch operand']
  #allocation3 [shape = 'f32[8,32]{1,0:T(8,128)}', space=vmem, size = 0x1000, scoped, tag = 'scratch operand']
  %s0 = inlined_call_operand.vmem [shape: s32[8], index: 0, kind: input, shape index: {}]
  %s1 = inlined_call_operand.vmem [shape: f32[20,1,32], index: 1, kind: input, shape index: {}]
  %s2 = inlined_call_operand.vmem [shape: f32[32,128], index: 2, kind: input, shape index: {}]
  %s3 = inlined_call_operand.vmem [shape: f32[32,128], index: 3, kind: input, shape index: {}]
  %s4 = inlined_call_operand.vmem [shape: f32[1,128], index: 4, kind: input, shape index: {}]
  %s5 = inlined_call_operand.vmem [shape: f32[32,8], index: 5, kind: input, shape index: {}]
  %s6 = inlined_call_operand.vmem [shape: f32[1,8], index: 6, kind: input, shape index: {}]
  %s7 = inlined_call_operand.hbm [shape: f32[8,8], index: 7, kind: output, shape index: {}]
  %s8 = sld [smem:[#allocation0]]
  $region42: #{lstm_tagger_forward.1} parent=0
    _
  %s10 = ssub.s32 1, %s8
  %s11 = scalar_select 0, %s10, %s8
  $region1: #{lstm_tagger_forward.1} parent=0
    #allocation4 [shape = 'u8[512]{0}', space=smem, size = 0x200, scoped, tag = 'input window, operand 0, single buffered']
    #allocation5 [shape = 's32[1]{0}', space=sflag, size = 0x4, scoped, tag = 'scoped memory for lstm_tagger_forward.1']
    #allocation6 [shape = 's32[1]{0}', space=sflag, size = 0x4, scoped, tag = 'scoped memory for lstm_tagger_forward.1']
    #allocation7 [shape = 'u8[4096]{0}', space=vmem, size = 0x1000, scoped, tag = 'output window, operand 0, single buffered']
    %12 = vsyncpa [#allocation6], 0
    %13 = vsyncpa [#allocation5], 0
    // Predicated region
    $region2: #{lstm_tagger_forward.1} parent=1 // pred_check
      _
    $region3: #{lstm_tagger_forward.1} parent=1 // pred_check_branch
      %15 = sbr.rel (0) target = $region5
    $region4: #{lstm_tagger_forward.1} parent=1 // pred_region
      %s17 = ssub.s32 16, 16
      %18 = vsyncadd [#allocation6], %s17
      %s20 = sshll.u32 %s0, 4
      %s21 = int_to_ptr.vmem [resolvable:$true] %s20
      %23 = dma.vmem_to_smem %s21, 16, [#allocation4], [#allocation6]
    $region5: #{lstm_tagger_forward.1} parent=1 // pred_fallthru
      _
    // Predicated region
    $region6: #{lstm_tagger_forward.1} parent=1 // pred_check
      _
    $region7: #{lstm_tagger_forward.1} parent=1 // pred_check_branch
      %25 = sbr.rel (0) target = $region9
    $region8: #{lstm_tagger_forward.1} parent=1 // pred_region
      _
    $region9: #{lstm_tagger_forward.1} parent=1 // pred_fallthru
      _
    // Predicated region
    $region10: #{lstm_tagger_forward.1} parent=1 // pred_check
      _
    $region11: #{lstm_tagger_forward.1} parent=1 // pred_check_branch
      %27 = sbr.rel (0) target = $region13
    $region12: #{lstm_tagger_forward.1} parent=1 // pred_region
      _
    $region13: #{lstm_tagger_forward.1} parent=1 // pred_fallthru
      _
    // Predicated region
    $region14: #{lstm_tagger_forward.1} parent=1 // pred_check
      _
    $region15: #{lstm_tagger_forward.1} parent=1 // pred_check_branch
      %29 = sbr.rel (0) target = $region17
    $region16: #{lstm_tagger_forward.1} parent=1 // pred_region
      _
    $region17: #{lstm_tagger_forward.1} parent=1 // pred_fallthru
      _
    // Predicated region
    $region18: #{lstm_tagger_forward.1} parent=1 // pred_check
      _
    $region19: #{lstm_tagger_forward.1} parent=1 // pred_check_branch
      %31 = sbr.rel (0) target = $region21
    $region20: #{lstm_tagger_forward.1} parent=1 // pred_region
      _
    $region21: #{lstm_tagger_forward.1} parent=1 // pred_fallthru
      _
    // Predicated region
    $region22: #{lstm_tagger_forward.1} parent=1 // pred_check
      _
    $region23: #{lstm_tagger_forward.1} parent=1 // pred_check_branch
      %33 = sbr.rel (0) target = $region25
    $region24: #{lstm_tagger_forward.1} parent=1 // pred_region
      _
    $region25: #{lstm_tagger_forward.1} parent=1 // pred_fallthru
      _
    // Predicated region
    $region26: #{lstm_tagger_forward.1} parent=1 // pred_check
      _
    $region27: #{lstm_tagger_forward.1} parent=1 // pred_check_branch
      %35 = sbr.rel (0) target = $region29
    $region28: #{lstm_tagger_forward.1} parent=1 // pred_region
      _
    $region29: #{lstm_tagger_forward.1} parent=1 // pred_fallthru
      _
    // Predicated region
    $region30: #{lstm_tagger_forward.1} parent=1 // pred_check
      _
    $region31: #{lstm_tagger_forward.1} parent=1 // pred_check_branch
      %37 = sbr.rel (0) target = $region33
    $region32: #{lstm_tagger_forward.1} parent=1 // pred_region
      %38 = dma.done [#allocation6], 16
    $region33: #{lstm_tagger_forward.1} parent=1 // pred_fallthru
      _
    %39 = sfence
    %s40 = sld [smem:[#allocation4]]
    %s41 = scalar_lea.vmem %s1, %s40
    %v42 = vld [vmem:[%s41] sm:$0x1]
    %vm43 = vcmask 253952
    %44 = vst.msk [vmem:[#allocation2] sm:$0x1] %vm43, %v42
    %s45 = sld [smem:[#allocation4 + $0x1]]
    %s46 = scalar_lea.vmem %s1, %s45
    %v47 = vld [vmem:[%s46] sm:$0x1]
    %48 = vst.msk [vmem:[#allocation2 + $0x1] sm:$0x1] %vm43, %v47
    %s49 = sld [smem:[#allocation4 + $0x2]]
    %s50 = scalar_lea.vmem %s1, %s49
    %v51 = vld [vmem:[%s50] sm:$0x1]
    %52 = vst.msk [vmem:[#allocation2 + $0x2] sm:$0x1] %vm43, %v51
    %s53 = sld [smem:[#allocation4 + $0x3]]
    %s54 = scalar_lea.vmem %s1, %s53
    %v55 = vld [vmem:[%s54] sm:$0x1]
    %56 = vst.msk [vmem:[#allocation2 + $0x3] sm:$0x1] %vm43, %v55
    %s57 = sld [smem:[#allocation4 + $0x4]]
    %s58 = scalar_lea.vmem %s1, %s57
    %v59 = vld [vmem:[%s58] sm:$0x1]
    %60 = vst.msk [vmem:[#allocation2 + $0x4] sm:$0x1] %vm43, %v59
    %s61 = sld [smem:[#allocation4 + $0x5]]
    %s62 = scalar_lea.vmem %s1, %s61
    %v63 = vld [vmem:[%s62] sm:$0x1]
    %64 = vst.msk [vmem:[#allocation2 + $0x5] sm:$0x1] %vm43, %v63
    %s65 = sld [smem:[#allocation4 + $0x6]]
    %s66 = scalar_lea.vmem %s1, %s65
    %v67 = vld [vmem:[%s66] sm:$0x1]
    %68 = vst.msk [vmem:[#allocation2 + $0x6] sm:$0x1] %vm43, %v67
    %s69 = sld [smem:[#allocation4 + $0x7]]
    %s70 = scalar_lea.vmem %s1, %s69
    %v71 = vld [vmem:[%s70] sm:$0x1]
    %72 = vst.msk [vmem:[#allocation2 + $0x7] sm:$0x1] %vm43, %v71
    %v73 = vld [vmem:[#allocation2] sm:$0xff]
    %v74 = vld [vmem:[%s2] sm:$0xff]
    %v75 = vld [vmem:[%s2 + $0x8] sm:$0xff]
    %v76 = vld [vmem:[%s2 + $0x10] sm:$0xff]
    %v77 = vld [vmem:[%s2 + $0x18] sm:$0xff]
    %v78 = vld [vmem:[%s4] sm:$0x1]
    %v80 = vlaneseq
    %v81 = vshrl.u32 %v80, 7
    %v82 = vsub.s32 0, %v81
    %v83 = vrot.slane %v78, %v82
    %vm85 = vcmask 261120
    %v87 = vsel %vm85, %v73, 0
    %89 = vmatprep.subr.mxu0 0.0
    %90 = vmatpush1.msra.mxu0 0.0
    %91 = vmatprep.subr.mxu0 0.0
    %92 = vmatpush1.msra.mxu0 0.0
    %93 = vmatprep.subr.mxu0 0.0
    %94 = vmatpush1.msra.mxu0 0.0
    %95 = vmatprep.subr.mxu0 0.0
    %96 = vmatpush1.msra.mxu0 0.0
    %97 = vmatprep.subr.mxu0 0.0
    %98 = vmatpush1.msra.mxu0 0.0
    %99 = vmatprep.subr.mxu0 0.0
    %100 = vmatpush1.msra.mxu0 0.0
    %101 = vmatprep.subr.mxu0 0.0
    %102 = vmatpush1.msra.mxu0 0.0
    %103 = vmatprep.subr.mxu0 0.0
    %104 = vmatpush1.msra.mxu0 0.0
    %105 = vmatprep.subr.mxu0 0.0
    %106 = vmatpush1.msra.mxu0 0.0
    %107 = vmatprep.subr.mxu0 0.0
    %108 = vmatpush1.msra.mxu0 0.0
    %109 = vmatprep.subr.mxu0 0.0
    %110 = vmatpush1.msra.mxu0 0.0
    %111 = vmatprep.subr.mxu0 0.0
    %112 = vmatpush1.msra.mxu0 0.0
    %113 = vmatprep.subr.mxu0 0.0
    %114 = vmatpush1.msra.mxu0 %v77
    %115 = vmatprep.subr.mxu0 0.0
    %116 = vmatpush1.msra.mxu0 %v76
    %117 = vmatprep.subr.mxu0 0.0
    %118 = vmatpush1.msra.mxu0 %v75
    %119 = vmatprep.subr.mxu0 0.0
    %120 = vmatpush1.msra.mxu0 %v74
    %121 = vmatprep.subr.mxu0 0.0
    %122 = vmatpush2.msra.mxu0 0.0
    %123 = vmatprep.subr.mxu0 0.0
    %124 = vmatpush2.msra.mxu0 0.0
    %125 = vmatprep.subr.mxu0 0.0
    %126 = vmatpush2.msra.mxu0 0.0
    %127 = vmatprep.subr.mxu0 0.0
    %128 = vmatpush2.msra.mxu0 0.0
    %129 = vmatprep.subr.mxu0 0.0
    %130 = vmatpush2.msra.mxu0 0.0
    %131 = vmatprep.subr.mxu0 0.0
    %132 = vmatpush2.msra.mxu0 0.0
    %133 = vmatprep.subr.mxu0 0.0
    %134 = vmatpush2.msra.mxu0 0.0
    %135 = vmatprep.subr.mxu0 0.0
    %136 = vmatpush2.msra.mxu0 0.0
    %137 = vmatprep.subr.mxu0 0.0
    %138 = vmatpush2.msra.mxu0 0.0
    %139 = vmatprep.subr.mxu0 0.0
    %140 = vmatpush2.msra.mxu0 0.0
    %141 = vmatprep.subr.mxu0 0.0
    %142 = vmatpush2.msra.mxu0 0.0
    %143 = vmatprep.subr.mxu0 0.0
    %144 = vmatpush2.msra.mxu0 0.0
    %145 = vmatprep.subr.mxu0 0.0
    %146 = vmatpush2.msra.mxu0 0.0
    %147 = vmatprep.subr.mxu0 0.0
    %148 = vmatpush2.msra.mxu0 0.0
    %149 = vmatprep.subr.mxu0 0.0
    %150 = vmatpush2.msra.mxu0 0.0
    %151 = vmatprep.subr.mxu0 0.0
    %152 = vmatpush2.msra.mxu0 0.0
    %153 = vmatprep.mubr.f32.mxu0 0.0
    %154 = vmatmul.mubr.f32.gmra.mxu0 %v87
    %v155 = vpop.f32.mrf.mxu0
    %v156 = vadd.f32 %v83, %v155
    %v157 = vpop.f32.mrf.mxu0
    %158 = vdwg.mxu0
    %v159 = vlaneseq
    %v160 = vand.u32 %v159, 127
    %vm161 = vcmp.ge.s32.totalorder %v160, 64
    %vm162 = vcmp.lt.s32.totalorder %v160, 96
    %vm163 = vmand %vm161, %vm162
    %v164 = vld [vmem:[%s3] sm:$0xff]
    %v165 = vld [vmem:[%s3 + $0x8] sm:$0xff]
    %v166 = vld [vmem:[%s3 + $0x10] sm:$0xff]
    %v167 = vld [vmem:[%s3 + $0x18] sm:$0xff]
    %v169 = vsel %vm85, 0.0, 0
    %171 = vmatprep.subr.mxu0 0.0
    %172 = vmatpush1.msra.mxu0 0.0
    %173 = vmatprep.subr.mxu0 0.0
    %174 = vmatpush1.msra.mxu0 0.0
    %175 = vmatprep.subr.mxu0 0.0
    %176 = vmatpush1.msra.mxu0 0.0
    %177 = vmatprep.subr.mxu0 0.0
    %178 = vmatpush1.msra.mxu0 0.0
    %179 = vmatprep.subr.mxu0 0.0
    %180 = vmatpush1.msra.mxu0 0.0
    %181 = vmatprep.subr.mxu0 0.0
    %182 = vmatpush1.msra.mxu0 0.0
    %183 = vmatprep.subr.mxu0 0.0
    %184 = vmatpush1.msra.mxu0 0.0
    %185 = vmatprep.subr.mxu0 0.0
    %186 = vmatpush1.msra.mxu0 0.0
    %187 = vmatprep.subr.mxu0 0.0
    %188 = vmatpush1.msra.mxu0 0.0
    %189 = vmatprep.subr.mxu0 0.0
    %190 = vmatpush1.msra.mxu0 0.0
    %191 = vmatprep.subr.mxu0 0.0
    %192 = vmatpush1.msra.mxu0 0.0
    %193 = vmatprep.subr.mxu0 0.0
    %194 = vmatpush1.msra.mxu0 0.0
    %195 = vmatprep.subr.mxu0 0.0
    %196 = vmatpush1.msra.mxu0 %v167
    %197 = vmatprep.subr.mxu0 0.0
    %198 = vmatpush1.msra.mxu0 %v166
    %199 = vmatprep.subr.mxu0 0.0
    %200 = vmatpush1.msra.mxu0 %v165
    %201 = vmatprep.subr.mxu0 0.0
    %202 = vmatpush1.msra.mxu0 %v164
    %203 = vmatprep.subr.mxu0 0.0
    %204 = vmatpush2.msra.mxu0 0.0
    %205 = vmatprep.subr.mxu0 0.0
    %206 = vmatpush2.msra.mxu0 0.0
    %207 = vmatprep.subr.mxu0 0.0
    %208 = vmatpush2.msra.mxu0 0.0
    %209 = vmatprep.subr.mxu0 0.0
    %210 = vmatpush2.msra.mxu0 0.0
    %211 = vmatprep.subr.mxu0 0.0
    %212 = vmatpush2.msra.mxu0 0.0
    %213 = vmatprep.subr.mxu0 0.0
    %214 = vmatpush2.msra.mxu0 0.0
    %215 = vmatprep.subr.mxu0 0.0
    %216 = vmatpush2.msra.mxu0 0.0
    %217 = vmatprep.subr.mxu0 0.0
    %218 = vmatpush2.msra.mxu0 0.0
    %219 = vmatprep.subr.mxu0 0.0
    %220 = vmatpush2.msra.mxu0 0.0
    %221 = vmatprep.subr.mxu0 0.0
    %222 = vmatpush2.msra.mxu0 0.0
    %223 = vmatprep.subr.mxu0 0.0
    %224 = vmatpush2.msra.mxu0 0.0
    %225 = vmatprep.subr.mxu0 0.0
    %226 = vmatpush2.msra.mxu0 0.0
    %227 = vmatprep.subr.mxu0 0.0
    %228 = vmatpush2.msra.mxu0 0.0
    %229 = vmatprep.subr.mxu0 0.0
    %230 = vmatpush2.msra.mxu0 0.0
    %231 = vmatprep.subr.mxu0 0.0
    %232 = vmatpush2.msra.mxu0 0.0
    %233 = vmatprep.subr.mxu0 0.0
    %234 = vmatpush2.msra.mxu0 0.0
    %235 = vmatprep.mubr.f32.mxu0 0.0
    %236 = vmatmul.mubr.f32.gmra.mxu0 %v169
    %v237 = vpop.f32.mrf.mxu0
    %v238 = vadd.f32 0.0, %v237
    %v239 = vpop.f32.mrf.mxu0
    %240 = vdwg.mxu0
    %v241 = vadd.f32 %v156, %v238
    %v242 = vtanh.pop %v241
    %v243 = vxor.u32 %v241, 2147483648
    %v244 = vmul.f32 %v243, 1.442695
    %v245 = vpow.pop %v244
    %v246 = vadd.f32 %v245, 1.0
    %v247 = vrcp.pop %v246
    %v248 = vmul.f32 1.0, %v247
    %v249 = vsel %vm163, %v242, %v248
    %v250 = vmul.f32 %v249, 0.0
    %252 = vrot.lane.b32.xlu0 %v249, 64
    %v253 = vpop.permute.xlu0 %252
    %v255 = vmul.f32 %v249, %v253
    %257 = vrot.lane.b32.xlu0 %v255, 32
    %v258 = vpop.permute.xlu0 %257
    %v260 = vadd.f32 %v250, %v258
    %v261 = vtanh.pop %v260
    %263 = vrot.lane.b32.xlu0 %v261, 64
    %v264 = vpop.permute.xlu0 %263
    %v266 = vmul.f32 %v249, %v264
    %268 = vrot.lane.b32.xlu0 %v266, 32
    %v269 = vpop.permute.xlu0 %268
    %271 = vst.msk [vmem:[#allocation3] sm:$0x1] %vm43, %v269
    %v272 = vld [vmem:[%s3] sm:$0xff]
    %v273 = vld [vmem:[%s3 + $0x8] sm:$0xff]
    %v274 = vld [vmem:[%s3 + $0x10] sm:$0xff]
    %v275 = vld [vmem:[%s3 + $0x18] sm:$0xff]
    %v276 = vsel %vm85, %v269, 0
    %278 = vmatprep.subr.mxu0 0.0
    %279 = vmatpush1.msra.mxu0 0.0
    %280 = vmatprep.subr.mxu0 0.0
    %281 = vmatpush1.msra.mxu0 0.0
    %282 = vmatprep.subr.mxu0 0.0
    %283 = vmatpush1.msra.mxu0 0.0
    %284 = vmatprep.subr.mxu0 0.0
    %285 = vmatpush1.msra.mxu0 0.0
    %286 = vmatprep.subr.mxu0 0.0
    %287 = vmatpush1.msra.mxu0 0.0
    %288 = vmatprep.subr.mxu0 0.0
    %289 = vmatpush1.msra.mxu0 0.0
    %290 = vmatprep.subr.mxu0 0.0
    %291 = vmatpush1.msra.mxu0 0.0
    %292 = vmatprep.subr.mxu0 0.0
    %293 = vmatpush1.msra.mxu0 0.0
    %294 = vmatprep.subr.mxu0 0.0
    %295 = vmatpush1.msra.mxu0 0.0
    %296 = vmatprep.subr.mxu0 0.0
    %297 = vmatpush1.msra.mxu0 0.0
    %298 = vmatprep.subr.mxu0 0.0
    %299 = vmatpush1.msra.mxu0 0.0
    %300 = vmatprep.subr.mxu0 0.0
    %301 = vmatpush1.msra.mxu0 0.0
    %302 = vmatprep.subr.mxu0 0.0
    %303 = vmatpush1.msra.mxu0 %v275
    %304 = vmatprep.subr.mxu0 0.0
    %305 = vmatpush1.msra.mxu0 %v274
    %306 = vmatprep.subr.mxu0 0.0
    %307 = vmatpush1.msra.mxu0 %v273
    %308 = vmatprep.subr.mxu0 0.0
    %309 = vmatpush1.msra.mxu0 %v272
    %310 = vmatprep.subr.mxu0 0.0
    %311 = vmatpush2.msra.mxu0 0.0
    %312 = vmatprep.subr.mxu0 0.0
    %313 = vmatpush2.msra.mxu0 0.0
    %314 = vmatprep.subr.mxu0 0.0
    %315 = vmatpush2.msra.mxu0 0.0
    %316 = vmatprep.subr.mxu0 0.0
    %317 = vmatpush2.msra.mxu0 0.0
    %318 = vmatprep.subr.mxu0 0.0
    %319 = vmatpush2.msra.mxu0 0.0
    %320 = vmatprep.subr.mxu0 0.0
    %321 = vmatpush2.msra.mxu0 0.0
    %322 = vmatprep.subr.mxu0 0.0
    %323 = vmatpush2.msra.mxu0 0.0
    %324 = vmatprep.subr.mxu0 0.0
    %325 = vmatpush2.msra.mxu0 0.0
    %326 = vmatprep.subr.mxu0 0.0
    %327 = vmatpush2.msra.mxu0 0.0
    %328 = vmatprep.subr.mxu0 0.0
    %329 = vmatpush2.msra.mxu0 0.0
    %330 = vmatprep.subr.mxu0 0.0
    %331 = vmatpush2.msra.mxu0 0.0
    %332 = vmatprep.subr.mxu0 0.0
    %333 = vmatpush2.msra.mxu0 0.0
    %334 = vmatprep.subr.mxu0 0.0
    %335 = vmatpush2.msra.mxu0 0.0
    %336 = vmatprep.subr.mxu0 0.0
    %337 = vmatpush2.msra.mxu0 0.0
    %338 = vmatprep.subr.mxu0 0.0
    %339 = vmatpush2.msra.mxu0 0.0
    %340 = vmatprep.subr.mxu0 0.0
    %341 = vmatpush2.msra.mxu0 0.0
    %342 = vmatprep.mubr.f32.mxu0 0.0
    %343 = vmatmul.mubr.f32.gmra.mxu0 %v276
    %v344 = vpop.f32.mrf.mxu0
    %v345 = vadd.f32 0.0, %v344
    %v346 = vpop.f32.mrf.mxu0
    %347 = vdwg.mxu0
    %v349 = vrot.slane %v345, 7
    %v351 = vadd.f32 %v156, %v349
    %v352 = vtanh.pop %v351
    %v353 = vxor.u32 %v351, 2147483648
    %v354 = vmul.f32 %v353, 1.442695
    %v355 = vpow.pop %v354
    %v356 = vadd.f32 %v355, 1.0
    %v357 = vrcp.pop %v356
    %v358 = vmul.f32 1.0, %v357
    %v359 = vsel %vm163, %v352, %v358
    %v361 = vrot.slane %v260, 7
    %v363 = vmul.f32 %v359, %v361
    %365 = vrot.lane.b32.xlu0 %v359, 64
    %v366 = vpop.permute.xlu0 %365
    %v368 = vmul.f32 %v359, %v366
    %370 = vrot.lane.b32.xlu0 %v368, 32
    %v371 = vpop.permute.xlu0 %370
    %v373 = vadd.f32 %v363, %v371
    %v374 = vtanh.pop %v373
    %376 = vrot.lane.b32.xlu0 %v374, 64
    %v377 = vpop.permute.xlu0 %376
    %v379 = vmul.f32 %v359, %v377
    %381 = vrot.lane.b32.xlu0 %v379, 32
    %v382 = vpop.permute.xlu0 %381
    %vm384 = vcmask 254977
    %385 = vst.msk [vmem:[#allocation3] sm:$0x2] %vm384, %v382
    %v386 = vld [vmem:[%s3] sm:$0xff]
    %v387 = vld [vmem:[%s3 + $0x8] sm:$0xff]
    %v388 = vld [vmem:[%s3 + $0x10] sm:$0xff]
    %v389 = vld [vmem:[%s3 + $0x18] sm:$0xff]
    %v390 = vrot.slane %v379, 1
    %391 = vrot.lane.b32.xlu0 %v390, 32
    %v392 = vpop.permute.xlu0 %391
    %v393 = vsel %vm85, %v392, 0
    %395 = vmatprep.subr.mxu0 0.0
    %396 = vmatpush1.msra.mxu0 0.0
    %397 = vmatprep.subr.mxu0 0.0
    %398 = vmatpush1.msra.mxu0 0.0
    %399 = vmatprep.subr.mxu0 0.0
    %400 = vmatpush1.msra.mxu0 0.0
    %401 = vmatprep.subr.mxu0 0.0
    %402 = vmatpush1.msra.mxu0 0.0
    %403 = vmatprep.subr.mxu0 0.0
    %404 = vmatpush1.msra.mxu0 0.0
    %405 = vmatprep.subr.mxu0 0.0
    %406 = vmatpush1.msra.mxu0 0.0
    %407 = vmatprep.subr.mxu0 0.0
    %408 = vmatpush1.msra.mxu0 0.0
    %409 = vmatprep.subr.mxu0 0.0
    %410 = vmatpush1.msra.mxu0 0.0
    %411 = vmatprep.subr.mxu0 0.0
    %412 = vmatpush1.msra.mxu0 0.0
    %413 = vmatprep.subr.mxu0 0.0
    %414 = vmatpush1.msra.mxu0 0.0
    %415 = vmatprep.subr.mxu0 0.0
    %416 = vmatpush1.msra.mxu0 0.0
    %417 = vmatprep.subr.mxu0 0.0
    %418 = vmatpush1.msra.mxu0 0.0
    %419 = vmatprep.subr.mxu0 0.0
    %420 = vmatpush1.msra.mxu0 %v389
    %421 = vmatprep.subr.mxu0 0.0
    %422 = vmatpush1.msra.mxu0 %v388
    %423 = vmatprep.subr.mxu0 0.0
    %424 = vmatpush1.msra.mxu0 %v387
    %425 = vmatprep.subr.mxu0 0.0
    %426 = vmatpush1.msra.mxu0 %v386
    %427 = vmatprep.subr.mxu0 0.0
    %428 = vmatpush2.msra.mxu0 0.0
    %429 = vmatprep.subr.mxu0 0.0
    %430 = vmatpush2.msra.mxu0 0.0
    %431 = vmatprep.subr.mxu0 0.0
    %432 = vmatpush2.msra.mxu0 0.0
    %433 = vmatprep.subr.mxu0 0.0
    %434 = vmatpush2.msra.mxu0 0.0
    %435 = vmatprep.subr.mxu0 0.0
    %436 = vmatpush2.msra.mxu0 0.0
    %437 = vmatprep.subr.mxu0 0.0
    %438 = vmatpush2.msra.mxu0 0.0
    %439 = vmatprep.subr.mxu0 0.0
    %440 = vmatpush2.msra.mxu0 0.0
    %441 = vmatprep.subr.mxu0 0.0
    %442 = vmatpush2.msra.mxu0 0.0
    %443 = vmatprep.subr.mxu0 0.0
    %444 = vmatpush2.msra.mxu0 0.0
    %445 = vmatprep.subr.mxu0 0.0
    %446 = vmatpush2.msra.mxu0 0.0
    %447 = vmatprep.subr.mxu0 0.0
    %448 = vmatpush2.msra.mxu0 0.0
    %449 = vmatprep.subr.mxu0 0.0
    %450 = vmatpush2.msra.mxu0 0.0
    %451 = vmatprep.subr.mxu0 0.0
    %452 = vmatpush2.msra.mxu0 0.0
    %453 = vmatprep.subr.mxu0 0.0
    %454 = vmatpush2.msra.mxu0 0.0
    %455 = vmatprep.subr.mxu0 0.0
    %456 = vmatpush2.msra.mxu0 0.0
    %457 = vmatprep.subr.mxu0 0.0
    %458 = vmatpush2.msra.mxu0 0.0
    %459 = vmatprep.mubr.f32.mxu0 0.0
    %460 = vmatmul.mubr.f32.gmra.mxu0 %v393
    %v461 = vpop.f32.mrf.mxu0
    %v462 = vadd.f32 0.0, %v461
    %v463 = vpop.f32.mrf.mxu0
    %464 = vdwg.mxu0
    %v466 = vrot.slane %v462, 6
    %v468 = vadd.f32 %v156, %v466
    %v469 = vtanh.pop %v468
    %v470 = vxor.u32 %v468, 2147483648
    %v471 = vmul.f32 %v470, 1.442695
    %v472 = vpow.pop %v471
    %v473 = vadd.f32 %v472, 1.0
    %v474 = vrcp.pop %v473
    %v475 = vmul.f32 1.0, %v474
    %v476 = vsel %vm163, %v469, %v475
    %v478 = vrot.slane %v373, 7
    %v480 = vmul.f32 %v476, %v478
    %482 = vrot.lane.b32.xlu0 %v476, 64
    %v483 = vpop.permute.xlu0 %482
    %v485 = vmul.f32 %v476, %v483
    %487 = vrot.lane.b32.xlu0 %v485, 32
    %v488 = vpop.permute.xlu0 %487
    %v490 = vadd.f32 %v480, %v488
    %v491 = vtanh.pop %v490
    %493 = vrot.lane.b32.xlu0 %v491, 64
    %v494 = vpop.permute.xlu0 %493
    %v496 = vmul.f32 %v476, %v494
    %498 = vrot.lane.b32.xlu0 %v496, 32
    %v499 = vpop.permute.xlu0 %498
    %vm501 = vcmask 256002
    %502 = vst.msk [vmem:[#allocation3] sm:$0x4] %vm501, %v499
    %v503 = vld [vmem:[%s3] sm:$0xff]
    %v504 = vld [vmem:[%s3 + $0x8] sm:$0xff]
    %v505 = vld [vmem:[%s3 + $0x10] sm:$0xff]
    %v506 = vld [vmem:[%s3 + $0x18] sm:$0xff]
    %v507 = vrot.slane %v496, 2
    %508 = vrot.lane.b32.xlu0 %v507, 32
    %v509 = vpop.permute.xlu0 %508
    %v510 = vsel %vm85, %v509, 0
    %512 = vmatprep.subr.mxu0 0.0
    %513 = vmatpush1.msra.mxu0 0.0
    %514 = vmatprep.subr.mxu0 0.0
    %515 = vmatpush1.msra.mxu0 0.0
    %516 = vmatprep.subr.mxu0 0.0
    %517 = vmatpush1.msra.mxu0 0.0
    %518 = vmatprep.subr.mxu0 0.0
    %519 = vmatpush1.msra.mxu0 0.0
    %520 = vmatprep.subr.mxu0 0.0
    %521 = vmatpush1.msra.mxu0 0.0
    %522 = vmatprep.subr.mxu0 0.0
    %523 = vmatpush1.msra.mxu0 0.0
    %524 = vmatprep.subr.mxu0 0.0
    %525 = vmatpush1.msra.mxu0 0.0
    %526 = vmatprep.subr.mxu0 0.0
    %527 = vmatpush1.msra.mxu0 0.0
    %528 = vmatprep.subr.mxu0 0.0
    %529 = vmatpush1.msra.mxu0 0.0
    %530 = vmatprep.subr.mxu0 0.0
    %531 = vmatpush1.msra.mxu0 0.0
    %532 = vmatprep.subr.mxu0 0.0
    %533 = vmatpush1.msra.mxu0 0.0
    %534 = vmatprep.subr.mxu0 0.0
    %535 = vmatpush1.msra.mxu0 0.0
    %536 = vmatprep.subr.mxu0 0.0
    %537 = vmatpush1.msra.mxu0 %v506
    %538 = vmatprep.subr.mxu0 0.0
    %539 = vmatpush1.msra.mxu0 %v505
    %540 = vmatprep.subr.mxu0 0.0
    %541 = vmatpush1.msra.mxu0 %v504
    %542 = vmatprep.subr.mxu0 0.0
    %543 = vmatpush1.msra.mxu0 %v503
    %544 = vmatprep.subr.mxu0 0.0
    %545 = vmatpush2.msra.mxu0 0.0
    %546 = vmatprep.subr.mxu0 0.0
    %547 = vmatpush2.msra.mxu0 0.0
    %548 = vmatprep.subr.mxu0 0.0
    %549 = vmatpush2.msra.mxu0 0.0
    %550 = vmatprep.subr.mxu0 0.0
    %551 = vmatpush2.msra.mxu0 0.0
    %552 = vmatprep.subr.mxu0 0.0
    %553 = vmatpush2.msra.mxu0 0.0
    %554 = vmatprep.subr.mxu0 0.0
    %555 = vmatpush2.msra.mxu0 0.0
    %556 = vmatprep.subr.mxu0 0.0
    %557 = vmatpush2.msra.mxu0 0.0
    %558 = vmatprep.subr.mxu0 0.0
    %559 = vmatpush2.msra.mxu0 0.0
    %560 = vmatprep.subr.mxu0 0.0
    %561 = vmatpush2.msra.mxu0 0.0
    %562 = vmatprep.subr.mxu0 0.0
    %563 = vmatpush2.msra.mxu0 0.0
    %564 = vmatprep.subr.mxu0 0.0
    %565 = vmatpush2.msra.mxu0 0.0
    %566 = vmatprep.subr.mxu0 0.0
    %567 = vmatpush2.msra.mxu0 0.0
    %568 = vmatprep.subr.mxu0 0.0
    %569 = vmatpush2.msra.mxu0 0.0
    %570 = vmatprep.subr.mxu0 0.0
    %571 = vmatpush2.msra.mxu0 0.0
    %572 = vmatprep.subr.mxu0 0.0
    %573 = vmatpush2.msra.mxu0 0.0
    %574 = vmatprep.subr.mxu0 0.0
    %575 = vmatpush2.msra.mxu0 0.0
    %576 = vmatprep.mubr.f32.mxu0 0.0
    %577 = vmatmul.mubr.f32.gmra.mxu0 %v510
    %v578 = vpop.f32.mrf.mxu0
    %v579 = vadd.f32 0.0, %v578
    %v580 = vpop.f32.mrf.mxu0
    %581 = vdwg.mxu0
    %v583 = vrot.slane %v579, 5
    %v585 = vadd.f32 %v156, %v583
    %v586 = vtanh.pop %v585
    %v587 = vxor.u32 %v585, 2147483648
    %v588 = vmul.f32 %v587, 1.442695
    %v589 = vpow.pop %v588
    %v590 = vadd.f32 %v589, 1.0
    %v591 = vrcp.pop %v590
    %v592 = vmul.f32 1.0, %v591
    %v593 = vsel %vm163, %v586, %v592
    %v595 = vrot.slane %v490, 7
    %v597 = vmul.f32 %v593, %v595
    %599 = vrot.lane.b32.xlu0 %v593, 64
    %v600 = vpop.permute.xlu0 %599
    %v602 = vmul.f32 %v593, %v600
    %604 = vrot.lane.b32.xlu0 %v602, 32
    %v605 = vpop.permute.xlu0 %604
    %v607 = vadd.f32 %v597, %v605
    %v608 = vtanh.pop %v607
    %610 = vrot.lane.b32.xlu0 %v608, 64
    %v611 = vpop.permute.xlu0 %610
    %v613 = vmul.f32 %v593, %v611
    %615 = vrot.lane.b32.xlu0 %v613, 32
    %v616 = vpop.permute.xlu0 %615
    %vm618 = vcmask 257027
    %619 = vst.msk [vmem:[#allocation3] sm:$0x8] %vm618, %v616
    %v620 = vld [vmem:[%s3] sm:$0xff]
    %v621 = vld [vmem:[%s3 + $0x8] sm:$0xff]
    %v622 = vld [vmem:[%s3 + $0x10] sm:$0xff]
    %v623 = vld [vmem:[%s3 + $0x18] sm:$0xff]
    %v624 = vrot.slane %v613, 3
    %625 = vrot.lane.b32.xlu0 %v624, 32
    %v626 = vpop.permute.xlu0 %625
    %v627 = vsel %vm85, %v626, 0
    %629 = vmatprep.subr.mxu0 0.0
    %630 = vmatpush1.msra.mxu0 0.0
    %631 = vmatprep.subr.mxu0 0.0
    %632 = vmatpush1.msra.mxu0 0.0
    %633 = vmatprep.subr.mxu0 0.0
    %634 = vmatpush1.msra.mxu0 0.0
    %635 = vmatprep.subr.mxu0 0.0
    %636 = vmatpush1.msra.mxu0 0.0
    %637 = vmatprep.subr.mxu0 0.0
    %638 = vmatpush1.msra.mxu0 0.0
    %639 = vmatprep.subr.mxu0 0.0
    %640 = vmatpush1.msra.mxu0 0.0
    %641 = vmatprep.subr.mxu0 0.0
    %642 = vmatpush1.msra.mxu0 0.0
    %643 = vmatprep.subr.mxu0 0.0
    %644 = vmatpush1.msra.mxu0 0.0
    %645 = vmatprep.subr.mxu0 0.0
    %646 = vmatpush1.msra.mxu0 0.0
    %647 = vmatprep.subr.mxu0 0.0
    %648 = vmatpush1.msra.mxu0 0.0
    %649 = vmatprep.subr.mxu0 0.0
    %650 = vmatpush1.msra.mxu0 0.0
    %651 = vmatprep.subr.mxu0 0.0
    %652 = vmatpush1.msra.mxu0 0.0
    %653 = vmatprep.subr.mxu0 0.0
    %654 = vmatpush1.msra.mxu0 %v623
    %655 = vmatprep.subr.mxu0 0.0
    %656 = vmatpush1.msra.mxu0 %v622
    %657 = vmatprep.subr.mxu0 0.0
    %658 = vmatpush1.msra.mxu0 %v621
    %659 = vmatprep.subr.mxu0 0.0
    %660 = vmatpush1.msra.mxu0 %v620
    %661 = vmatprep.subr.mxu0 0.0
    %662 = vmatpush2.msra.mxu0 0.0
    %663 = vmatprep.subr.mxu0 0.0
    %664 = vmatpush2.msra.mxu0 0.0
    %665 = vmatprep.subr.mxu0 0.0
    %666 = vmatpush2.msra.mxu0 0.0
    %667 = vmatprep.subr.mxu0 0.0
    %668 = vmatpush2.msra.mxu0 0.0
    %669 = vmatprep.subr.mxu0 0.0
    %670 = vmatpush2.msra.mxu0 0.0
    %671 = vmatprep.subr.mxu0 0.0
    %672 = vmatpush2.msra.mxu0 0.0
    %673 = vmatprep.subr.mxu0 0.0
    %674 = vmatpush2.msra.mxu0 0.0
    %675 = vmatprep.subr.mxu0 0.0
    %676 = vmatpush2.msra.mxu0 0.0
    %677 = vmatprep.subr.mxu0 0.0
    %678 = vmatpush2.msra.mxu0 0.0
    %679 = vmatprep.subr.mxu0 0.0
    %680 = vmatpush2.msra.mxu0 0.0
    %681 = vmatprep.subr.mxu0 0.0
    %682 = vmatpush2.msra.mxu0 0.0
    %683 = vmatprep.subr.mxu0 0.0
    %684 = vmatpush2.msra.mxu0 0.0
    %685 = vmatprep.subr.mxu0 0.0
    %686 = vmatpush2.msra.mxu0 0.0
    %687 = vmatprep.subr.mxu0 0.0
    %688 = vmatpush2.msra.mxu0 0.0
    %689 = vmatprep.subr.mxu0 0.0
    %690 = vmatpush2.msra.mxu0 0.0
    %691 = vmatprep.subr.mxu0 0.0
    %692 = vmatpush2.msra.mxu0 0.0
    %693 = vmatprep.mubr.f32.mxu0 0.0
    %694 = vmatmul.mubr.f32.gmra.mxu0 %v627
    %v695 = vpop.f32.mrf.mxu0
    %v696 = vadd.f32 0.0, %v695
    %v697 = vpop.f32.mrf.mxu0
    %698 = vdwg.mxu0
    %v700 = vrot.slane %v696, 4
    %v702 = vadd.f32 %v156, %v700
    %v703 = vtanh.pop %v702
    %v704 = vxor.u32 %v702, 2147483648
    %v705 = vmul.f32 %v704, 1.442695
    %v706 = vpow.pop %v705
    %v707 = vadd.f32 %v706, 1.0
    %v708 = vrcp.pop %v707
    %v709 = vmul.f32 1.0, %v708
    %v710 = vsel %vm163, %v703, %v709
    %v712 = vrot.slane %v607, 7
    %v714 = vmul.f32 %v710, %v712
    %716 = vrot.lane.b32.xlu0 %v710, 64
    %v717 = vpop.permute.xlu0 %716
    %v719 = vmul.f32 %v710, %v717
    %721 = vrot.lane.b32.xlu0 %v719, 32
    %v722 = vpop.permute.xlu0 %721
    %v724 = vadd.f32 %v714, %v722
    %v725 = vtanh.pop %v724
    %727 = vrot.lane.b32.xlu0 %v725, 64
    %v728 = vpop.permute.xlu0 %727
    %v730 = vmul.f32 %v710, %v728
    %732 = vrot.lane.b32.xlu0 %v730, 32
    %v733 = vpop.permute.xlu0 %732
    %vm735 = vcmask 258052
    %736 = vst.msk [vmem:[#allocation3] sm:$0x10] %vm735, %v733
    %v737 = vld [vmem:[%s3] sm:$0xff]
    %v738 = vld [vmem:[%s3 + $0x8] sm:$0xff]
    %v739 = vld [vmem:[%s3 + $0x10] sm:$0xff]
    %v740 = vld [vmem:[%s3 + $0x18] sm:$0xff]
    %v741 = vrot.slane %v730, 4
    %742 = vrot.lane.b32.xlu0 %v741, 32
    %v743 = vpop.permute.xlu0 %742
    %v744 = vsel %vm85, %v743, 0
    %746 = vmatprep.subr.mxu0 0.0
    %747 = vmatpush1.msra.mxu0 0.0
    %748 = vmatprep.subr.mxu0 0.0
    %749 = vmatpush1.msra.mxu0 0.0
    %750 = vmatprep.subr.mxu0 0.0
    %751 = vmatpush1.msra.mxu0 0.0
    %752 = vmatprep.subr.mxu0 0.0
    %753 = vmatpush1.msra.mxu0 0.0
    %754 = vmatprep.subr.mxu0 0.0
    %755 = vmatpush1.msra.mxu0 0.0
    %756 = vmatprep.subr.mxu0 0.0
    %757 = vmatpush1.msra.mxu0 0.0
    %758 = vmatprep.subr.mxu0 0.0
    %759 = vmatpush1.msra.mxu0 0.0
    %760 = vmatprep.subr.mxu0 0.0
    %761 = vmatpush1.msra.mxu0 0.0
    %762 = vmatprep.subr.mxu0 0.0
    %763 = vmatpush1.msra.mxu0 0.0
    %764 = vmatprep.subr.mxu0 0.0
    %765 = vmatpush1.msra.mxu0 0.0
    %766 = vmatprep.subr.mxu0 0.0
    %767 = vmatpush1.msra.mxu0 0.0
    %768 = vmatprep.subr.mxu0 0.0
    %769 = vmatpush1.msra.mxu0 0.0
    %770 = vmatprep.subr.mxu0 0.0
    %771 = vmatpush1.msra.mxu0 %v740
    %772 = vmatprep.subr.mxu0 0.0
    %773 = vmatpush1.msra.mxu0 %v739
    %774 = vmatprep.subr.mxu0 0.0
    %775 = vmatpush1.msra.mxu0 %v738
    %776 = vmatprep.subr.mxu0 0.0
    %777 = vmatpush1.msra.mxu0 %v737
    %778 = vmatprep.subr.mxu0 0.0
    %779 = vmatpush2.msra.mxu0 0.0
    %780 = vmatprep.subr.mxu0 0.0
    %781 = vmatpush2.msra.mxu0 0.0
    %782 = vmatprep.subr.mxu0 0.0
    %783 = vmatpush2.msra.mxu0 0.0
    %784 = vmatprep.subr.mxu0 0.0
    %785 = vmatpush2.msra.mxu0 0.0
    %786 = vmatprep.subr.mxu0 0.0
    %787 = vmatpush2.msra.mxu0 0.0
    %788 = vmatprep.subr.mxu0 0.0
    %789 = vmatpush2.msra.mxu0 0.0
    %790 = vmatprep.subr.mxu0 0.0
    %791 = vmatpush2.msra.mxu0 0.0
    %792 = vmatprep.subr.mxu0 0.0
    %793 = vmatpush2.msra.mxu0 0.0
    %794 = vmatprep.subr.mxu0 0.0
    %795 = vmatpush2.msra.mxu0 0.0
    %796 = vmatprep.subr.mxu0 0.0
    %797 = vmatpush2.msra.mxu0 0.0
    %798 = vmatprep.subr.mxu0 0.0
    %799 = vmatpush2.msra.mxu0 0.0
    %800 = vmatprep.subr.mxu0 0.0
    %801 = vmatpush2.msra.mxu0 0.0
    %802 = vmatprep.subr.mxu0 0.0
    %803 = vmatpush2.msra.mxu0 0.0
    %804 = vmatprep.subr.mxu0 0.0
    %805 = vmatpush2.msra.mxu0 0.0
    %806 = vmatprep.subr.mxu0 0.0
    %807 = vmatpush2.msra.mxu0 0.0
    %808 = vmatprep.subr.mxu0 0.0
    %809 = vmatpush2.msra.mxu0 0.0
    %810 = vmatprep.mubr.f32.mxu0 0.0
    %811 = vmatmul.mubr.f32.gmra.mxu0 %v744
    %v812 = vpop.f32.mrf.mxu0
    %v813 = vadd.f32 0.0, %v812
    %v814 = vpop.f32.mrf.mxu0
    %815 = vdwg.mxu0
    %v817 = vrot.slane %v813, 3
    %v819 = vadd.f32 %v156, %v817
    %v820 = vtanh.pop %v819
    %v821 = vxor.u32 %v819, 2147483648
    %v822 = vmul.f32 %v821, 1.442695
    %v823 = vpow.pop %v822
    %v824 = vadd.f32 %v823, 1.0
    %v825 = vrcp.pop %v824
    %v826 = vmul.f32 1.0, %v825
    %v827 = vsel %vm163, %v820, %v826
    %v829 = vrot.slane %v724, 7
    %v831 = vmul.f32 %v827, %v829
    %833 = vrot.lane.b32.xlu0 %v827, 64
    %v834 = vpop.permute.xlu0 %833
    %v836 = vmul.f32 %v827, %v834
    %838 = vrot.lane.b32.xlu0 %v836, 32
    %v839 = vpop.permute.xlu0 %838
    %v841 = vadd.f32 %v831, %v839
    %v842 = vtanh.pop %v841
    %844 = vrot.lane.b32.xlu0 %v842, 64
    %v845 = vpop.permute.xlu0 %844
    %v847 = vmul.f32 %v827, %v845
    %849 = vrot.lane.b32.xlu0 %v847, 32
    %v850 = vpop.permute.xlu0 %849
    %vm852 = vcmask 259077
    %853 = vst.msk [vmem:[#allocation3] sm:$0x20] %vm852, %v850
    %v854 = vld [vmem:[%s3] sm:$0xff]
    %v855 = vld [vmem:[%s3 + $0x8] sm:$0xff]
    %v856 = vld [vmem:[%s3 + $0x10] sm:$0xff]
    %v857 = vld [vmem:[%s3 + $0x18] sm:$0xff]
    %v858 = vrot.slane %v847, 5
    %859 = vrot.lane.b32.xlu0 %v858, 32
    %v860 = vpop.permute.xlu0 %859
    %v861 = vsel %vm85, %v860, 0
    %863 = vmatprep.subr.mxu0 0.0
    %864 = vmatpush1.msra.mxu0 0.0
    %865 = vmatprep.subr.mxu0 0.0
    %866 = vmatpush1.msra.mxu0 0.0
    %867 = vmatprep.subr.mxu0 0.0
    %868 = vmatpush1.msra.mxu0 0.0
    %869 = vmatprep.subr.mxu0 0.0
    %870 = vmatpush1.msra.mxu0 0.0
    %871 = vmatprep.subr.mxu0 0.0
    %872 = vmatpush1.msra.mxu0 0.0
    %873 = vmatprep.subr.mxu0 0.0
    %874 = vmatpush1.msra.mxu0 0.0
    %875 = vmatprep.subr.mxu0 0.0
    %876 = vmatpush1.msra.mxu0 0.0
    %877 = vmatprep.subr.mxu0 0.0
    %878 = vmatpush1.msra.mxu0 0.0
    %879 = vmatprep.subr.mxu0 0.0
    %880 = vmatpush1.msra.mxu0 0.0
    %881 = vmatprep.subr.mxu0 0.0
    %882 = vmatpush1.msra.mxu0 0.0
    %883 = vmatprep.subr.mxu0 0.0
    %884 = vmatpush1.msra.mxu0 0.0
    %885 = vmatprep.subr.mxu0 0.0
    %886 = vmatpush1.msra.mxu0 0.0
    %887 = vmatprep.subr.mxu0 0.0
    %888 = vmatpush1.msra.mxu0 %v857
    %889 = vmatprep.subr.mxu0 0.0
    %890 = vmatpush1.msra.mxu0 %v856
    %891 = vmatprep.subr.mxu0 0.0
    %892 = vmatpush1.msra.mxu0 %v855
    %893 = vmatprep.subr.mxu0 0.0
    %894 = vmatpush1.msra.mxu0 %v854
    %895 = vmatprep.subr.mxu0 0.0
    %896 = vmatpush2.msra.mxu0 0.0
    %897 = vmatprep.subr.mxu0 0.0
    %898 = vmatpush2.msra.mxu0 0.0
    %899 = vmatprep.subr.mxu0 0.0
    %900 = vmatpush2.msra.mxu0 0.0
    %901 = vmatprep.subr.mxu0 0.0
    %902 = vmatpush2.msra.mxu0 0.0
    %903 = vmatprep.subr.mxu0 0.0
    %904 = vmatpush2.msra.mxu0 0.0
    %905 = vmatprep.subr.mxu0 0.0
    %906 = vmatpush2.msra.mxu0 0.0
    %907 = vmatprep.subr.mxu0 0.0
    %908 = vmatpush2.msra.mxu0 0.0
    %909 = vmatprep.subr.mxu0 0.0
    %910 = vmatpush2.msra.mxu0 0.0
    %911 = vmatprep.subr.mxu0 0.0
    %912 = vmatpush2.msra.mxu0 0.0
    %913 = vmatprep.subr.mxu0 0.0
    %914 = vmatpush2.msra.mxu0 0.0
    %915 = vmatprep.subr.mxu0 0.0
    %916 = vmatpush2.msra.mxu0 0.0
    %917 = vmatprep.subr.mxu0 0.0
    %918 = vmatpush2.msra.mxu0 0.0
    %919 = vmatprep.subr.mxu0 0.0
    %920 = vmatpush2.msra.mxu0 0.0
    %921 = vmatprep.subr.mxu0 0.0
    %922 = vmatpush2.msra.mxu0 0.0
    %923 = vmatprep.subr.mxu0 0.0
    %924 = vmatpush2.msra.mxu0 0.0
    %925 = vmatprep.subr.mxu0 0.0
    %926 = vmatpush2.msra.mxu0 0.0
    %927 = vmatprep.mubr.f32.mxu0 0.0
    %928 = vmatmul.mubr.f32.gmra.mxu0 %v861
    %v929 = vpop.f32.mrf.mxu0
    %v930 = vadd.f32 0.0, %v929
    %v931 = vpop.f32.mrf.mxu0
    %932 = vdwg.mxu0
    %v934 = vrot.slane %v930, 2
    %v936 = vadd.f32 %v156, %v934
    %v937 = vtanh.pop %v936
    %v938 = vxor.u32 %v936, 2147483648
    %v939 = vmul.f32 %v938, 1.442695
    %v940 = vpow.pop %v939
    %v941 = vadd.f32 %v940, 1.0
    %v942 = vrcp.pop %v941
    %v943 = vmul.f32 1.0, %v942
    %v944 = vsel %vm163, %v937, %v943
    %v946 = vrot.slane %v841, 7
    %v948 = vmul.f32 %v944, %v946
    %950 = vrot.lane.b32.xlu0 %v944, 64
    %v951 = vpop.permute.xlu0 %950
    %v953 = vmul.f32 %v944, %v951
    %955 = vrot.lane.b32.xlu0 %v953, 32
    %v956 = vpop.permute.xlu0 %955
    %v958 = vadd.f32 %v948, %v956
    %v959 = vtanh.pop %v958
    %961 = vrot.lane.b32.xlu0 %v959, 64
    %v962 = vpop.permute.xlu0 %961
    %v964 = vmul.f32 %v944, %v962
    %966 = vrot.lane.b32.xlu0 %v964, 32
    %v967 = vpop.permute.xlu0 %966
    %vm969 = vcmask 260102
    %970 = vst.msk [vmem:[#allocation3] sm:$0x40] %vm969, %v967
    %v971 = vld [vmem:[%s3] sm:$0xff]
    %v972 = vld [vmem:[%s3 + $0x8] sm:$0xff]
    %v973 = vld [vmem:[%s3 + $0x10] sm:$0xff]
    %v974 = vld [vmem:[%s3 + $0x18] sm:$0xff]
    %v975 = vrot.slane %v964, 6
    %976 = vrot.lane.b32.xlu0 %v975, 32
    %v977 = vpop.permute.xlu0 %976
    %v978 = vsel %vm85, %v977, 0
    %980 = vmatprep.subr.mxu0 0.0
    %981 = vmatpush1.msra.mxu0 0.0
    %982 = vmatprep.subr.mxu0 0.0
    %983 = vmatpush1.msra.mxu0 0.0
    %984 = vmatprep.subr.mxu0 0.0
    %985 = vmatpush1.msra.mxu0 0.0
    %986 = vmatprep.subr.mxu0 0.0
    %987 = vmatpush1.msra.mxu0 0.0
    %988 = vmatprep.subr.mxu0 0.0
    %989 = vmatpush1.msra.mxu0 0.0
    %990 = vmatprep.subr.mxu0 0.0
    %991 = vmatpush1.msra.mxu0 0.0
    %992 = vmatprep.subr.mxu0 0.0
    %993 = vmatpush1.msra.mxu0 0.0
    %994 = vmatprep.subr.mxu0 0.0
    %995 = vmatpush1.msra.mxu0 0.0
    %996 = vmatprep.subr.mxu0 0.0
    %997 = vmatpush1.msra.mxu0 0.0
    %998 = vmatprep.subr.mxu0 0.0
    %999 = vmatpush1.msra.mxu0 0.0
    %1000 = vmatprep.subr.mxu0 0.0
    %1001 = vmatpush1.msra.mxu0 0.0
    %1002 = vmatprep.subr.mxu0 0.0
    %1003 = vmatpush1.msra.mxu0 0.0
    %1004 = vmatprep.subr.mxu0 0.0
    %1005 = vmatpush1.msra.mxu0 %v974
    %1006 = vmatprep.subr.mxu0 0.0
    %1007 = vmatpush1.msra.mxu0 %v973
    %1008 = vmatprep.subr.mxu0 0.0
    %1009 = vmatpush1.msra.mxu0 %v972
    %1010 = vmatprep.subr.mxu0 0.0
    %1011 = vmatpush1.msra.mxu0 %v971
    %1012 = vmatprep.subr.mxu0 0.0
    %1013 = vmatpush2.msra.mxu0 0.0
    %1014 = vmatprep.subr.mxu0 0.0
    %1015 = vmatpush2.msra.mxu0 0.0
    %1016 = vmatprep.subr.mxu0 0.0
    %1017 = vmatpush2.msra.mxu0 0.0
    %1018 = vmatprep.subr.mxu0 0.0
    %1019 = vmatpush2.msra.mxu0 0.0
    %1020 = vmatprep.subr.mxu0 0.0
    %1021 = vmatpush2.msra.mxu0 0.0
    %1022 = vmatprep.subr.mxu0 0.0
    %1023 = vmatpush2.msra.mxu0 0.0
    %1024 = vmatprep.subr.mxu0 0.0
    %1025 = vmatpush2.msra.mxu0 0.0
    %1026 = vmatprep.subr.mxu0 0.0
    %1027 = vmatpush2.msra.mxu0 0.0
    %1028 = vmatprep.subr.mxu0 0.0
    %1029 = vmatpush2.msra.mxu0 0.0
    %1030 = vmatprep.subr.mxu0 0.0
    %1031 = vmatpush2.msra.mxu0 0.0
    %1032 = vmatprep.subr.mxu0 0.0
    %1033 = vmatpush2.msra.mxu0 0.0
    %1034 = vmatprep.subr.mxu0 0.0
    %1035 = vmatpush2.msra.mxu0 0.0
    %1036 = vmatprep.subr.mxu0 0.0
    %1037 = vmatpush2.msra.mxu0 0.0
    %1038 = vmatprep.subr.mxu0 0.0
    %1039 = vmatpush2.msra.mxu0 0.0
    %1040 = vmatprep.subr.mxu0 0.0
    %1041 = vmatpush2.msra.mxu0 0.0
    %1042 = vmatprep.subr.mxu0 0.0
    %1043 = vmatpush2.msra.mxu0 0.0
    %1044 = vmatprep.mubr.f32.mxu0 0.0
    %1045 = vmatmul.mubr.f32.gmra.mxu0 %v978
    %v1046 = vpop.f32.mrf.mxu0
    %v1047 = vadd.f32 0.0, %v1046
    %v1048 = vpop.f32.mrf.mxu0
    %1049 = vdwg.mxu0
    %v1051 = vrot.slane %v1047, 1
    %v1053 = vadd.f32 %v156, %v1051
    %v1054 = vtanh.pop %v1053
    %v1055 = vxor.u32 %v1053, 2147483648
    %v1056 = vmul.f32 %v1055, 1.442695
    %v1057 = vpow.pop %v1056
    %v1058 = vadd.f32 %v1057, 1.0
    %v1059 = vrcp.pop %v1058
    %v1060 = vmul.f32 1.0, %v1059
    %v1061 = vsel %vm163, %v1054, %v1060
    %v1063 = vrot.slane %v958, 7
    %v1065 = vmul.f32 %v1061, %v1063
    %1067 = vrot.lane.b32.xlu0 %v1061, 64
    %v1068 = vpop.permute.xlu0 %1067
    %v1070 = vmul.f32 %v1061, %v1068
    %1072 = vrot.lane.b32.xlu0 %v1070, 32
    %v1073 = vpop.permute.xlu0 %1072
    %v1075 = vadd.f32 %v1065, %v1073
    %v1076 = vtanh.pop %v1075
    %1078 = vrot.lane.b32.xlu0 %v1076, 64
    %v1079 = vpop.permute.xlu0 %1078
    %v1081 = vmul.f32 %v1061, %v1079
    %1083 = vrot.lane.b32.xlu0 %v1081, 32
    %v1084 = vpop.permute.xlu0 %1083
    %vm1086 = vcmask 261127
    %1087 = vst.msk [vmem:[#allocation3] sm:$0x80] %vm1086, %v1084
    %v1088 = vld [vmem:[#allocation3] sm:$0xff]
    %v1089 = vld [vmem:[%s5] sm:$0xff]
    %v1090 = vld [vmem:[%s5 + $0x8] sm:$0xff]
    %v1091 = vld [vmem:[%s5 + $0x10] sm:$0xff]
    %v1092 = vld [vmem:[%s5 + $0x18] sm:$0xff]
    %v1093 = vld [vmem:[%s6] sm:$0x1]
    %v1095 = vlaneseq
    %v1096 = vshrl.u32 %v1095, 7
    %v1097 = vsub.s32 0, %v1096
    %v1098 = vrot.slane %v1093, %v1097
    %v1101 = vsel %vm85, %v1088, 0
    %1103 = vmatprep.subr.mxu0 0.0
    %1104 = vmatpush1.msra.mxu0 0.0
    %1105 = vmatprep.subr.mxu0 0.0
    %1106 = vmatpush1.msra.mxu0 0.0
    %1107 = vmatprep.subr.mxu0 0.0
    %1108 = vmatpush1.msra.mxu0 0.0
    %1109 = vmatprep.subr.mxu0 0.0
    %1110 = vmatpush1.msra.mxu0 0.0
    %1111 = vmatprep.subr.mxu0 0.0
    %1112 = vmatpush1.msra.mxu0 0.0
    %1113 = vmatprep.subr.mxu0 0.0
    %1114 = vmatpush1.msra.mxu0 0.0
    %1115 = vmatprep.subr.mxu0 0.0
    %1116 = vmatpush1.msra.mxu0 0.0
    %1117 = vmatprep.subr.mxu0 0.0
    %1118 = vmatpush1.msra.mxu0 0.0
    %1119 = vmatprep.subr.mxu0 0.0
    %1120 = vmatpush1.msra.mxu0 0.0
    %1121 = vmatprep.subr.mxu0 0.0
    %1122 = vmatpush1.msra.mxu0 0.0
    %1123 = vmatprep.subr.mxu0 0.0
    %1124 = vmatpush1.msra.mxu0 0.0
    %1125 = vmatprep.subr.mxu0 0.0
    %1126 = vmatpush1.msra.mxu0 0.0
    %1127 = vmatprep.subr.mxu0 0.0
    %1128 = vmatpush1.msra.mxu0 %v1092
    %1129 = vmatprep.subr.mxu0 0.0
    %1130 = vmatpush1.msra.mxu0 %v1091
    %1131 = vmatprep.subr.mxu0 0.0
    %1132 = vmatpush1.msra.mxu0 %v1090
    %1133 = vmatprep.subr.mxu0 0.0
    %1134 = vmatpush1.msra.mxu0 %v1089
    %1135 = vmatprep.subr.mxu0 0.0
    %1136 = vmatpush2.msra.mxu0 0.0
    %1137 = vmatprep.subr.mxu0 0.0
    %1138 = vmatpush2.msra.mxu0 0.0
    %1139 = vmatprep.subr.mxu0 0.0
    %1140 = vmatpush2.msra.mxu0 0.0
    %1141 = vmatprep.subr.mxu0 0.0
    %1142 = vmatpush2.msra.mxu0 0.0
    %1143 = vmatprep.subr.mxu0 0.0
    %1144 = vmatpush2.msra.mxu0 0.0
    %1145 = vmatprep.subr.mxu0 0.0
    %1146 = vmatpush2.msra.mxu0 0.0
    %1147 = vmatprep.subr.mxu0 0.0
    %1148 = vmatpush2.msra.mxu0 0.0
    %1149 = vmatprep.subr.mxu0 0.0
    %1150 = vmatpush2.msra.mxu0 0.0
    %1151 = vmatprep.subr.mxu0 0.0
    %1152 = vmatpush2.msra.mxu0 0.0
    %1153 = vmatprep.subr.mxu0 0.0
    %1154 = vmatpush2.msra.mxu0 0.0
    %1155 = vmatprep.subr.mxu0 0.0
    %1156 = vmatpush2.msra.mxu0 0.0
    %1157 = vmatprep.subr.mxu0 0.0
    %1158 = vmatpush2.msra.mxu0 0.0
    %1159 = vmatprep.subr.mxu0 0.0
    %1160 = vmatpush2.msra.mxu0 0.0
    %1161 = vmatprep.subr.mxu0 0.0
    %1162 = vmatpush2.msra.mxu0 0.0
    %1163 = vmatprep.subr.mxu0 0.0
    %1164 = vmatpush2.msra.mxu0 0.0
    %1165 = vmatprep.subr.mxu0 0.0
    %1166 = vmatpush2.msra.mxu0 0.0
    %1167 = vmatprep.mubr.f32.mxu0 0.0
    %1168 = vmatmul.mubr.f32.gmra.mxu0 %v1101
    %v1169 = vpop.f32.mrf.mxu0
    %v1170 = vadd.f32 %v1098, %v1169
    %v1171 = vpop.f32.mrf.mxu0
    %1172 = vdwg.mxu0
    %vm1173 = vcmask 64512
    %v1174 = vsel %vm1173, %v1170, -inf
    %1175 = vmax.xlane.f32.xlu0 %v1174
    %v1176 = vpop.xlane.xlu0 %1175
    %v1177 = vsub.f32 %v1170, %v1176
    %v1178 = vmul.f32 %v1177, 1.442695
    %v1179 = vpow.pop %v1178
    %v1180 = vsel %vm1173, %v1179, 0.0
    %1181 = vadd.xlane.f32.xlu0 %v1180
    %v1182 = vpop.xlane.xlu0 %1181
    %v1183 = vlog2.pop %v1182
    %v1184 = vmul.f32 %v1183, 0.6931472
    %v1185 = vsub.f32 %v1177, %v1184
    %1186 = vst.msk [vmem:[#allocation7] sm:$0xff] %vm1173, %v1185
    // Predicated region
    $region34: #{lstm_tagger_forward.1} parent=1 // pred_check
      _
    $region35: #{lstm_tagger_forward.1} parent=1 // pred_check_branch
      %1188 = sbr.rel (0) target = $region37
    $region36: #{lstm_tagger_forward.1} parent=1 // pred_region
      %s1190 = ssub.s32 128, 128
      %1191 = vsyncadd [#allocation5], %s1190
      %s1193 = sshll.u32 [#allocation7], 4
      %s1194 = int_to_ptr.vmem [resolvable:$true] %s1193
      %1196 = dma.vmem_to_hbm [thread:$0]  %s1194, 128, %s7, [#allocation5]
    $region37: #{lstm_tagger_forward.1} parent=1 // pred_fallthru
      _
    // Predicated region
    $region38: #{lstm_tagger_forward.1} parent=1 // pred_check
      _
    $region39: #{lstm_tagger_forward.1} parent=1 // pred_check_branch
      %1198 = sbr.rel (0) target = $region41
    $region40: #{lstm_tagger_forward.1} parent=1 // pred_region
      %1199 = dma.done [#allocation5], 128
    $region41: #{lstm_tagger_forward.1} parent=1 // pred_fallthru
      _
    %1200 = vsyncpa [#allocation5], 1
    %1201 = vsyncpa [#allocation6], 1

</llo_original>
